<compile_context>
chip_gen: v5e
topology: v5e:2x2
jax: 0.10.0
libtpu: 0.0.40
codegen_flags: <defaults>
</compile_context>

<pallas_src>
import functools
import math

import jax
import jax.numpy as jnp
from jax import lax
from jax.experimental import pallas as pl
from jax.experimental.pallas import tpu as pltpu


# ---------------------------------------------------------------------------
# Fused per-image kernel: in-VMEM im2col + stem conv + BN + SiLU + global avg
# pool + 1x1 conv + SiLU + fc + softmax.
# ---------------------------------------------------------------------------
def _rexnet_fused_kernel(ph_ref, ms_ref, wT_ref, w1_ref, w2_ref, b2_ref, o_ref,
                         *, C, W2, L):
    """
    ph_ref: (4*C, Lp)  bf16  parity-phase grids of the padded image, flattened:
                             row = (row_parity*2 + col_parity)*C + c, lane = i*W2 + j
    ms_ref: (1, L)     f32   pooling mask*scale: 1/HW on valid lanes, 0 on pad lanes
    wT_ref: (C1, 9*C)  bf16  stem conv weight (BN scale folded), col = (kh*3+kw)*C + c
    w1_ref: (C1, C2)   bf16  features 1x1 conv weight (32 -> 1280)
    w2_ref: (C2, Kp)   bf16  fcn weight, classes zero-padded to Kp=128 lanes
    b2_ref: (1, Kp)    f32   fcn bias; padded entries pinned to -1e9
    o_ref:  (1, Kp)    f32   softmax probabilities for this image (padded classes ~ 0)
    """
    F = ph_ref[...]                                                  # (4C, Lp)

    # --- in-VMEM im2col: each 3x3 tap of the stride-2 conv is a contiguous
    #     length-L lane slice of one parity-phase grid, offset W2*(kh//2)+(kw//2).
    rows = []
    for kh in range(3):
        for kw in range(3):
            p = (kh % 2) * 2 + (kw % 2)
            s = W2 * (kh // 2) + (kw // 2)
            rows.append(F[p * C:(p + 1) * C, s:s + L])               # (C, L)
    patches = jnp.concatenate(rows, axis=0)                          # (9C, L)

    # --- stem conv (+ folded BatchNorm scale) as one 2-D MXU matmul, f32 acc.
    y = jnp.dot(wT_ref[...], patches, preferred_element_type=jnp.float32)   # (C1, L)
    # SiLU with an overflow-safe sigmoid (tanh -> EUP slot).
    y = y * (0.5 * (jnp.tanh(0.5 * y) + 1.0))

    # --- global average pool over the valid spatial lanes (mask + exact f32 1/HW
    #     are folded into ms); lane-axis contraction gives a (1, C1) row directly.
    pooled = lax.dot_general(ms_ref[...], y, (((1,), (1,)), ((), ())),
                             preferred_element_type=jnp.float32)            # (1, C1)

    # --- features 1x1 conv (32 -> 1280) + SiLU.  Dropout2d: eval-mode identity.
    h = jnp.dot(pooled.astype(jnp.bfloat16), w1_ref[...],
                preferred_element_type=jnp.float32)                         # (1, C2)
    a = h * (0.5 * (jnp.tanh(0.5 * h) + 1.0))

    # --- fcn (1280 -> classes padded to 128 lanes) + exact softmax.
    logits = jnp.dot(a.astype(jnp.bfloat16), w2_ref[...],
                     preferred_element_type=jnp.float32) + b2_ref[...]      # (1, Kp)
    e = jnp.exp(logits - jnp.max(logits, axis=-1, keepdims=True))           # pads -> 0
    o_ref[...] = e / jnp.sum(e, axis=-1, keepdims=True)                     # exact divide


def rexnet_fused_call(ph, ms, wT, w1, w2p, b2p, *, W2, L):
    N, FourC, Lp = ph.shape
    C = FourC // 4
    C1, K9 = wT.shape
    C2, Kp = w2p.shape
    kernel = functools.partial(_rexnet_fused_kernel, C=C, W2=W2, L=L)

    flops = 2 * N * (C1 * K9 * L + C1 * L + C1 * C2 + C2 * Kp)
    transc = N * (C1 * L + C2 + Kp)
    bytes_acc = (ph.size * 2 + ms.size * 4 + wT.size * 2 + w1.size * 2
                 + w2p.size * 2 + b2p.size * 4 + N * Kp * 4)

    return pl.pallas_call(
        kernel,
        out_shape=jax.ShapeDtypeStruct((N, 1, Kp), jnp.float32),
        grid=(N,),                                   # one image per step, megacore-able
        in_specs=[
            pl.BlockSpec((None, FourC, Lp), lambda n: (n, 0, 0)),   # per-image phases
            pl.BlockSpec((1, L), lambda n: (0, 0)),                 # pool mask*scale
            pl.BlockSpec((C1, K9), lambda n: (0, 0)),               # stem weight
            pl.BlockSpec((C1, C2), lambda n: (0, 0)),               # features weight
            pl.BlockSpec((C2, Kp), lambda n: (0, 0)),               # fcn weight
            pl.BlockSpec((1, Kp), lambda n: (0, 0)),                # fcn bias
        ],
        out_specs=pl.BlockSpec((None, 1, Kp), lambda n: (n, 0, 0)),
        compiler_params=pltpu.CompilerParams(dimension_semantics=("parallel",)),
        cost_estimate=pl.CostEstimate(flops=flops, transcendentals=transc,
                                      bytes_accessed=bytes_acc),
    )(ph, ms, wT, w1, w2p, b2p)


# ---------------------------------------------------------------------------
# Glue: deterministic parameter init (PyTorch-matching shapes) + input prep
# ---------------------------------------------------------------------------
def init_params(key, channel=1, class_num=5, class_pad=128):
    stem_c = 32      # int(32 * width_multiple), width_multiple = 1.0
    feat_c = 1280    # int(1280 * width_multiple)
    k0, k1, k2 = jax.random.split(key, 3)

    def kaiming_uniform(k, shape, fan_in):
        bound = math.sqrt(6.0 / fan_in)  # torch kaiming_uniform_ default
        return jax.random.uniform(k, shape, jnp.float32, -bound, bound)

    # stem conv weight in (kh, kw, cin, cout) order -> rows (kh*3+kw)*C + c
    w_stem = kaiming_uniform(k0, (3, 3, channel, stem_c), fan_in=channel * 9)
    w2d = w_stem.reshape(9 * channel, stem_c)
    # Eval-mode BatchNorm2d with fresh stats (gamma=1, beta=0, mean=0, var=1)
    # is a pure per-channel scale (shift == 0) -> fold exactly into the weights.
    bn_scale = jnp.full((stem_c,), 1.0 / math.sqrt(1.0 + 1e-5), jnp.float32)
    wT = (w2d * bn_scale[None, :]).T.astype(jnp.bfloat16)            # (C1, 9*C)

    # features 1x1 conv (no bias)
    w1 = kaiming_uniform(k1, (stem_c, feat_c), fan_in=stem_c)
    # fcn 1x1 conv (bias initialized to 0); pad the class dim to 128 lanes,
    # padded logits are pinned to -1e9 via the bias so softmax ignores them.
    w2 = kaiming_uniform(k2, (feat_c, class_num), fan_in=feat_c)
    b2 = jnp.zeros((class_num,), jnp.float32)
    kp = max(class_pad, class_num)
    w2p = jnp.zeros((feat_c, kp), jnp.float32).at[:, :class_num].set(w2)
    b2p = jnp.full((1, kp), -1e9, jnp.float32).at[0, :class_num].set(b2)

    kernel_params = dict(wT=wT,
                         w1=w1.astype(jnp.bfloat16),
                         w2p=w2p.astype(jnp.bfloat16),
                         b2p=b2p)
    raw = dict(w_stem=w_stem, bn_scale=bn_scale, w1=w1, w2=w2, b2=b2)
    return kernel_params, raw


def _prep_inputs(x_nchw):
    """Constant-size parity-phase re-layout of the zero-padded input so the 3x3/stride-2
    taps become contiguous lane slices inside the kernel.  No 9x patch blow-up."""
    N, C, H, W = x_nchw.shape
    if H % 2 or W % 2:
        raise ValueError("even spatial sizes expected")  # TODO(synk): odd H/W support
    Ho, Wo = H // 2, W // 2
    H2, W2 = Ho + 1, Wo + 1                 # phase-grid dims of the padded input
    L = Ho * W2                             # wide (row-padded) patch length
    Lp = H2 * W2 + 1                        # +1 so every tap slice [s, s+L) is in range
    xp = jnp.pad(x_nchw, ((0, 0), (0, 0), (1, 1), (1, 1)))          # (N, C, H+2, W+2)
    ph = xp.reshape(N, C, H2, 2, W2, 2)
    ph = jnp.transpose(ph, (0, 3, 5, 1, 2, 4))                      # (N, 2, 2, C, H2, W2)
    ph = ph.reshape(N, 4 * C, H2 * W2)
    ph = jnp.pad(ph, ((0, 0), (0, 0), (0, Lp - H2 * W2)))           # (N, 4C, Lp)
    # pooling mask*scale: valid lanes are (m % W2) < Wo; exact f32 1/HW scale.
    lane = jnp.arange(L, dtype=jnp.int32)
    ms = jnp.where(lane % W2 < Wo, 1.0 / (Ho * Wo), 0.0).astype(jnp.float32)[None, :]
    return ph.astype(jnp.bfloat16), ms, (Ho, Wo, W2, L)


@functools.partial(jax.jit, static_argnames=("class_num",))
def rexnet_forward(x_nchw, params, class_num=5):
    ph, ms, (_, _, W2, L) = _prep_inputs(x_nchw)
    probs_pad = rexnet_fused_call(ph, ms, params["wT"], params["w1"],
                                  params["w2p"], params["b2p"], W2=W2, L=L)
    return probs_pad[:, 0, :class_num]      # drop padded (zero) classes


# ---------------------------------------------------------------------------
if __name__ == "__main__":
    key = jax.random.PRNGKey(0)
    pkey, xkey = jax.random.split(key)
    kparams, raw = init_params(pkey, channel=1, class_num=5)

    x = jax.random.normal(xkey, (2, 1, 16, 16), jnp.float32)   # NCHW, like PyTorch
    out = rexnet_forward(x, kparams, class_num=5)
    out = jax.block_until_ready(out)

    # Pure-f32 JAX reference following the ORIGINAL PyTorch op order
    # (3x3/s2 conv -> BN -> SiLU -> 1x1 conv on every pixel -> avg pool -> SiLU
    #  -> fc -> softmax) to validate the phase/im2col trick, pool commute, BN fold,
    # class padding, and bf16 matmul operands.
    y = lax.conv_general_dilated(
        x, raw["w_stem"], window_strides=(2, 2), padding=((1, 1), (1, 1)),
        dimension_numbers=("NCHW", "HWIO", "NCHW"))
    y = y * raw["bn_scale"][None, :, None, None]
    y = y * jax.nn.sigmoid(y)
    feats = jnp.einsum("nchw,cd->ndhw", y, raw["w1"])
    pooled = feats.mean(axis=(2, 3))
    a = pooled * jax.nn.sigmoid(pooled)
    ref = jax.nn.softmax(a @ raw["w2"] + raw["b2"][None, :], axis=-1)

    assert out.shape == (2, 5), out.shape
    assert bool(jnp.all(jnp.isfinite(out)))
    assert bool(jnp.allclose(jnp.sum(out, axis=-1), 1.0, atol=1e-3))
    max_err = float(jnp.max(jnp.abs(out - ref)))
    assert bool(jnp.allclose(out, ref, atol=2e-2)), max_err
    print("KERNEL_OK")
</pallas_src>

<mosaic_0001>
module attributes {stable_mosaic.version = 11 : i64} {
  func.func @_rexnet_fused_kernel(%arg0: i32, %arg1: memref<1x4x82xbf16, #tpu.memory_space<vmem>>, %arg2: memref<1x72xf32, #tpu.memory_space<vmem>>, %arg3: memref<32x9xbf16, #tpu.memory_space<vmem>>, %arg4: memref<32x1280xbf16, #tpu.memory_space<vmem>>, %arg5: memref<1280x128xbf16, #tpu.memory_space<vmem>>, %arg6: memref<1x128xf32, #tpu.memory_space<vmem>>, %arg7: memref<1x1x128xf32, #tpu.memory_space<vmem>>) attributes {dimension_semantics = [#tpu.dimension_semantics<parallel>], iteration_bounds = array<i64: 2>, scalar_prefetch = 0 : i64, scratch_operands = 0 : i64, tpu.core_type = #tpu.core_type<tc>, window_params = [{transform_indices = @transform_0, window_bounds = array<i64: 1, 4, 82>}, {pipeline_mode = #tpu.pipeline_mode<synchronous>, transform_indices = @transform_1, window_bounds = array<i64: 1, 72>}, {pipeline_mode = #tpu.pipeline_mode<synchronous>, transform_indices = @transform_2, window_bounds = array<i64: 32, 9>}, {pipeline_mode = #tpu.pipeline_mode<synchronous>, transform_indices = @transform_3, window_bounds = array<i64: 32, 1280>}, {pipeline_mode = #tpu.pipeline_mode<synchronous>, transform_indices = @transform_4, window_bounds = array<i64: 1280, 128>}, {pipeline_mode = #tpu.pipeline_mode<synchronous>, transform_indices = @transform_5, window_bounds = array<i64: 1, 128>}, {transform_indices = @transform_6, window_bounds = array<i64: 1, 1, 128>}]} {
    %c0 = arith.constant 0 : index
    %c0_0 = arith.constant 0 : index
    %c0_1 = arith.constant 0 : index
    %0 = vector.load %arg1[%c0, %c0_0, %c0_1] : memref<1x4x82xbf16, #tpu.memory_space<vmem>>, vector<1x4x82xbf16>
    %1 = vector.shape_cast %0 : vector<1x4x82xbf16> to vector<4x82xbf16>
    %2 = vector.extract_strided_slice %1 {offsets = [0, 0], sizes = [1, 72], strides = [1, 1]} : vector<4x82xbf16> to vector<1x72xbf16>
    %3 = vector.extract_strided_slice %1 {offsets = [1, 0], sizes = [1, 72], strides = [1, 1]} : vector<4x82xbf16> to vector<1x72xbf16>
    %4 = vector.extract_strided_slice %1 {offsets = [0, 1], sizes = [1, 72], strides = [1, 1]} : vector<4x82xbf16> to vector<1x72xbf16>
    %5 = vector.extract_strided_slice %1 {offsets = [2, 0], sizes = [1, 72], strides = [1, 1]} : vector<4x82xbf16> to vector<1x72xbf16>
    %6 = vector.extract_strided_slice %1 {offsets = [3, 0], sizes = [1, 72], strides = [1, 1]} : vector<4x82xbf16> to vector<1x72xbf16>
    %7 = vector.extract_strided_slice %1 {offsets = [2, 1], sizes = [1, 72], strides = [1, 1]} : vector<4x82xbf16> to vector<1x72xbf16>
    %8 = vector.extract_strided_slice %1 {offsets = [0, 9], sizes = [1, 72], strides = [1, 1]} : vector<4x82xbf16> to vector<1x72xbf16>
    %9 = vector.extract_strided_slice %1 {offsets = [1, 9], sizes = [1, 72], strides = [1, 1]} : vector<4x82xbf16> to vector<1x72xbf16>
    %10 = vector.extract_strided_slice %1 {offsets = [0, 10], sizes = [1, 72], strides = [1, 1]} : vector<4x82xbf16> to vector<1x72xbf16>
    %11 = tpu.concatenate %2, %3, %4, %5, %6, %7, %8, %9, %10 in 0 : vector<1x72xbf16>, vector<1x72xbf16>, vector<1x72xbf16>, vector<1x72xbf16>, vector<1x72xbf16>, vector<1x72xbf16>, vector<1x72xbf16>, vector<1x72xbf16>, vector<1x72xbf16> -> vector<9x72xbf16>
    %c0_2 = arith.constant 0 : index
    %c0_3 = arith.constant 0 : index
    %12 = vector.load %arg3[%c0_2, %c0_3] : memref<32x9xbf16, #tpu.memory_space<vmem>>, vector<32x9xbf16>
    %cst = arith.constant dense<0.000000e+00> : vector<32x72xf32>
    %13 = tpu.matmul %12, %11, %cst {dimension_numbers = #tpu.dot_dimension_numbers<[1], [0], [0], [1], [0, 0, 1, 1], [], []>} : vector<32x9xbf16>, vector<9x72xbf16>, vector<32x72xf32> -> vector<32x72xf32>
    %cst_4 = arith.constant 5.000000e-01 : f32
    %14 = vector.broadcast %cst_4 : f32 to vector<32x72xf32>
    %15 = arith.mulf %14, %13 : vector<32x72xf32>
    %16 = math.tanh %15 : vector<32x72xf32>
    %cst_5 = arith.constant 1.000000e+00 : f32
    %17 = vector.broadcast %cst_5 : f32 to vector<32x72xf32>
    %18 = arith.addf %16, %17 : vector<32x72xf32>
    %cst_6 = arith.constant 5.000000e-01 : f32
    %19 = vector.broadcast %cst_6 : f32 to vector<32x72xf32>
    %20 = arith.mulf %19, %18 : vector<32x72xf32>
    %21 = arith.mulf %13, %20 : vector<32x72xf32>
    %c0_7 = arith.constant 0 : index
    %c0_8 = arith.constant 0 : index
    %22 = vector.load %arg2[%c0_7, %c0_8] : memref<1x72xf32, #tpu.memory_space<vmem>>, vector<1x72xf32>
    %cst_9 = arith.constant dense<0.000000e+00> : vector<1x32xf32>
    %23 = tpu.matmul %22, %21, %cst_9 {dimension_numbers = #tpu.dot_dimension_numbers<[1], [1], [0], [0], [0, 0, 1, 0], [], []>} : vector<1x72xf32>, vector<32x72xf32>, vector<1x32xf32> -> vector<1x32xf32>
    %24 = arith.truncf %23 : vector<1x32xf32> to vector<1x32xbf16>
    %c0_10 = arith.constant 0 : index
    %c0_11 = arith.constant 0 : index
    %25 = vector.load %arg4[%c0_10, %c0_11] : memref<32x1280xbf16, #tpu.memory_space<vmem>>, vector<32x1280xbf16>
    %cst_12 = arith.constant dense<0.000000e+00> : vector<1x1280xf32>
    %26 = tpu.matmul %24, %25, %cst_12 {dimension_numbers = #tpu.dot_dimension_numbers<[1], [0], [0], [1], [0, 0, 1, 1], [], []>} : vector<1x32xbf16>, vector<32x1280xbf16>, vector<1x1280xf32> -> vector<1x1280xf32>
    %cst_13 = arith.constant 5.000000e-01 : f32
    %27 = vector.broadcast %cst_13 : f32 to vector<1x1280xf32>
    %28 = arith.mulf %27, %26 : vector<1x1280xf32>
    %29 = math.tanh %28 : vector<1x1280xf32>
    %cst_14 = arith.constant 1.000000e+00 : f32
    %30 = vector.broadcast %cst_14 : f32 to vector<1x1280xf32>
    %31 = arith.addf %29, %30 : vector<1x1280xf32>
    %cst_15 = arith.constant 5.000000e-01 : f32
    %32 = vector.broadcast %cst_15 : f32 to vector<1x1280xf32>
    %33 = arith.mulf %32, %31 : vector<1x1280xf32>
    %34 = arith.mulf %26, %33 : vector<1x1280xf32>
    %35 = arith.truncf %34 : vector<1x1280xf32> to vector<1x1280xbf16>
    %c0_16 = arith.constant 0 : index
    %c0_17 = arith.constant 0 : index
    %36 = vector.load %arg5[%c0_16, %c0_17] : memref<1280x128xbf16, #tpu.memory_space<vmem>>, vector<1280x128xbf16>
    %cst_18 = arith.constant dense<0.000000e+00> : vector<1x128xf32>
    %37 = tpu.matmul %35, %36, %cst_18 {dimension_numbers = #tpu.dot_dimension_numbers<[1], [0], [0], [1], [0, 0, 1, 1], [], []>} : vector<1x1280xbf16>, vector<1280x128xbf16>, vector<1x128xf32> -> vector<1x128xf32>
    %c0_19 = arith.constant 0 : index
    %c0_20 = arith.constant 0 : index
    %38 = vector.load %arg6[%c0_19, %c0_20] : memref<1x128xf32, #tpu.memory_space<vmem>>, vector<1x128xf32>
    %39 = arith.addf %37, %38 : vector<1x128xf32>
    %cst_21 = arith.constant dense<0xFF800000> : vector<1xf32>
    %40 = vector.multi_reduction <maximumf>, %39, %cst_21 [1] : vector<1x128xf32> to vector<1xf32>
    %41 = vector.shape_cast %40 : vector<1xf32> to vector<1x1xf32>
    %42 = vector.broadcast %41 : vector<1x1xf32> to vector<1x128xf32>
    %43 = arith.subf %39, %42 : vector<1x128xf32>
    %44 = math.exp %43 : vector<1x128xf32>
    %cst_22 = arith.constant dense<0.000000e+00> : vector<1xf32>
    %45 = vector.multi_reduction <add>, %44, %cst_22 [1] : vector<1x128xf32> to vector<1xf32>
    %46 = vector.shape_cast %45 : vector<1xf32> to vector<1x1xf32>
    %47 = vector.broadcast %46 : vector<1x1xf32> to vector<1x128xf32>
    %48 = arith.divf %44, %47 : vector<1x128xf32>
    %c0_23 = arith.constant 0 : index
    %c0_24 = arith.constant 0 : index
    %c0_25 = arith.constant 0 : index
    %49 = vector.load %arg7[%c0_23, %c0_24, %c0_25] : memref<1x1x128xf32, #tpu.memory_space<vmem>>, vector<1x1x128xf32>
    %50 = vector.shape_cast %49 : vector<1x1x128xf32> to vector<1x128xf32>
    %51 = vector.shape_cast %48 : vector<1x128xf32> to vector<1x1x128xf32>
    tpu.vector_store %arg7[%c0_23, %c0_24, %c0_25], %51 {strides = array<i32>} : memref<1x1x128xf32, #tpu.memory_space<vmem>>, vector<1x1x128xf32>,
    return
  }
  func.func @transform_0(%arg0: i32) -> (i32, i32, i32) {
    %c0_i32 = arith.constant 0 : i32
    %c0_i32_0 = arith.constant 0 : i32
    %c0_i32_1 = arith.constant 0 : i32
    return %arg0, %c0_i32, %c0_i32_0 : i32, i32, i32
  }
  func.func @transform_1(%arg0: i32) -> (i32, i32) {
    %c0_i32 = arith.constant 0 : i32
    %c0_i32_0 = arith.constant 0 : i32
    %c0_i32_1 = arith.constant 0 : i32
    return %c0_i32, %c0_i32_0 : i32, i32
  }
  func.func @transform_2(%arg0: i32) -> (i32, i32) {
    %c0_i32 = arith.constant 0 : i32
    %c0_i32_0 = arith.constant 0 : i32
    %c0_i32_1 = arith.constant 0 : i32
    return %c0_i32, %c0_i32_0 : i32, i32
  }
  func.func @transform_3(%arg0: i32) -> (i32, i32) {
    %c0_i32 = arith.constant 0 : i32
    %c0_i32_0 = arith.constant 0 : i32
    %c0_i32_1 = arith.constant 0 : i32
    return %c0_i32, %c0_i32_0 : i32, i32
  }
  func.func @transform_4(%arg0: i32) -> (i32, i32) {
    %c0_i32 = arith.constant 0 : i32
    %c0_i32_0 = arith.constant 0 : i32
    %c0_i32_1 = arith.constant 0 : i32
    return %c0_i32, %c0_i32_0 : i32, i32
  }
  func.func @transform_5(%arg0: i32) -> (i32, i32) {
    %c0_i32 = arith.constant 0 : i32
    %c0_i32_0 = arith.constant 0 : i32
    %c0_i32_1 = arith.constant 0 : i32
    return %c0_i32, %c0_i32_0 : i32, i32
  }
  func.func @transform_6(%arg0: i32) -> (i32, i32, i32) {
    %c0_i32 = arith.constant 0 : i32
    %c0_i32_0 = arith.constant 0 : i32
    %c0_i32_1 = arith.constant 0 : i32
    return %arg0, %c0_i32, %c0_i32_0 : i32, i32, i32
  }
}

</mosaic_0001>

<llo_original>
// kernel: rexnet_forward.1
$region0: #{rexnet_forward.1}
  #allocation0 [shape = 'u32[]', space=smem, size = 0x4, offset = 0x4, fixed_abs, tag = 'smem constant byte address 0x4 - core index']
  #allocation1 [shape = 'u32[72,128]{1,0:T(1,128)}', space=vmem, size = 0x9000, scoped, tag = 'internal scratch']
  %s0 = inlined_call_operand.vmem [shape: bf16[2,4,82], index: 0, kind: input, shape index: {}]
  %s1 = inlined_call_operand.vmem [shape: f32[1,72], index: 1, kind: input, shape index: {}]
  %s2 = inlined_call_operand.vmem [shape: bf16[32,9], index: 2, kind: input, shape index: {}]
  %s3 = inlined_call_operand.vmem [shape: bf16[32,1280], index: 3, kind: input, shape index: {}]
  %s4 = inlined_call_operand.vmem [shape: bf16[1280,128], index: 4, kind: input, shape index: {}]
  %s5 = inlined_call_operand.vmem [shape: f32[1,128], index: 5, kind: input, shape index: {}]
  %s6 = inlined_call_operand.hbm [shape: f32[2,1,128], index: 6, kind: output, shape index: {}]
  %s7 = sld [smem:[#allocation0]]
  $region57: #{rexnet_forward.1} parent=0
    _
  %s9 = ssub.s32 1, %s7
  %s10 = scalar_select 0, %s9, %s7
  $region1: #{rexnet_forward.1} parent=0
    #allocation2 [shape = 'u8[1024]{0}', space=vmem, size = 0x400, scoped, tag = 'output window, operand 0']
    #allocation3 [shape = 's32[2]{0}', space=sflag, size = 0x8, scoped, tag = 'scoped memory for rexnet_forward.1']
    %11 = vsyncpa [#allocation3], 0
    %s12 = scalar_lea.sflag [#allocation3], 1
    %13 = vsyncpa %s12, 0
    loop: start=0, step=1, limit=4
    $region2: #{rexnet_forward.1} parent=1 // loop_pre_header
      _
    $region3: #{rexnet_forward.1} parent=1 // loop_header
      %s15 = sphi 0, %s19
      %p16 = scmp.ge.s32.totalorder %s15, 4
      %s25 = sphi 0, %s27
      %s28 = sphi 0, %s25
      %s29 = sphi 0, %s28
      %s45 = sphi 0, %s29
      %s49 = sphi 0, %s49
      %s51 = sphi 0, %s49
      %s52 = sphi 0, %s51
      %s66 = sphi 0, %s52
      %s70 = sphi 0, %s70
      %s72 = sphi 0, %s70
      %s73 = sphi 0, %s72
      %s87 = sphi 0, %s73
      %s91 = sphi 0, %s91
      %s93 = sphi 0, %s91
      %s94 = sphi 0, %s93
      %s108 = sphi 0, %s94
      %s112 = sphi 0, %s112
      %s114 = sphi 0, %s112
      %s115 = sphi 0, %s114
      %s129 = sphi 0, %s115
      %s133 = sphi 0, %s133
      %s135 = sphi 0, %s133
      %s136 = sphi 0, %s135
      %s150 = sphi 0, %s136
      %s156 = sphi 0, %s158
      %s159 = sphi 0, %s156
      %s160 = sphi 0, %s159
      %s176 = sphi 0, %s160
    $region4: #{rexnet_forward.1} parent=1 // loop_header_branch
      %18 = sbr.rel (%p16) target = $region8
    $region5: #{rexnet_forward.1} parent=1 // loop_body
      %s20 = ssub.s32 %s15, 1
      %s21 = ssub.s32 %s15, 2
      %s22 = sadd.s32 %s15, 1
      %s23 = ssub.s32 %s15, %s22
      %p24 = scmp.eq.s32.totalorder %s23, 0
      %s26 = sadd.s32 %s25, 1
      %s27 = scalar_select %p24, %s25, %s26
      %p30 = pneg %p24
      %p31 = scmp.eq.s32.totalorder %s15, 1
      %p32 = por %p30, %p31
      %p33 = scmp.ne.s32.totalorder %s25, %s28
      %p34 = scmp.eq.s32.totalorder %s15, 0
      %p35 = por %p33, %p34
      %p36 = scmp.ne.s32.totalorder %s25, %s28
      %p37 = scmp.eq.s32.totalorder %s20, 1
      %p38 = por %p36, %p37
      %p39 = scmp.ne.s32.totalorder %s28, %s29
      %p40 = scmp.eq.s32.totalorder %s20, 0
      %p41 = por %p39, %p40
      %p42 = scmp.ne.s32.totalorder %s28, %s29
      %p43 = scmp.eq.s32.totalorder %s21, 1
      %p44 = por %p42, %p43
      %p46 = scmp.ne.s32.totalorder %s29, %s45
      %p47 = scmp.eq.s32.totalorder %s21, 0
      %p48 = por %p46, %p47
      %s50 = sadd.s32 %s49, 1
      %p53 = scmp.eq.s32.totalorder %s15, 1
      %p54 = scmp.ne.s32.totalorder %s49, %s51
      %p55 = scmp.eq.s32.totalorder %s15, 0
      %p56 = por %p54, %p55
      %p57 = scmp.ne.s32.totalorder %s49, %s51
      %p58 = scmp.eq.s32.totalorder %s20, 1
      %p59 = por %p57, %p58
      %p60 = scmp.ne.s32.totalorder %s51, %s52
      %p61 = scmp.eq.s32.totalorder %s20, 0
      %p62 = por %p60, %p61
      %p63 = scmp.ne.s32.totalorder %s51, %s52
      %p64 = scmp.eq.s32.totalorder %s21, 1
      %p65 = por %p63, %p64
      %p67 = scmp.ne.s32.totalorder %s52, %s66
      %p68 = scmp.eq.s32.totalorder %s21, 0
      %p69 = por %p67, %p68
      %s71 = sadd.s32 %s70, 1
      %p74 = scmp.eq.s32.totalorder %s15, 1
      %p75 = scmp.ne.s32.totalorder %s70, %s72
      %p76 = scmp.eq.s32.totalorder %s15, 0
      %p77 = por %p75, %p76
      %p78 = scmp.ne.s32.totalorder %s70, %s72
      %p79 = scmp.eq.s32.totalorder %s20, 1
      %p80 = por %p78, %p79
      %p81 = scmp.ne.s32.totalorder %s72, %s73
      %p82 = scmp.eq.s32.totalorder %s20, 0
      %p83 = por %p81, %p82
      %p84 = scmp.ne.s32.totalorder %s72, %s73
      %p85 = scmp.eq.s32.totalorder %s21, 1
      %p86 = por %p84, %p85
      %p88 = scmp.ne.s32.totalorder %s73, %s87
      %p89 = scmp.eq.s32.totalorder %s21, 0
      %p90 = por %p88, %p89
      %s92 = sadd.s32 %s91, 1
      %p95 = scmp.eq.s32.totalorder %s15, 1
      %p96 = scmp.ne.s32.totalorder %s91, %s93
      %p97 = scmp.eq.s32.totalorder %s15, 0
      %p98 = por %p96, %p97
      %p99 = scmp.ne.s32.totalorder %s91, %s93
      %p100 = scmp.eq.s32.totalorder %s20, 1
      %p101 = por %p99, %p100
      %p102 = scmp.ne.s32.totalorder %s93, %s94
      %p103 = scmp.eq.s32.totalorder %s20, 0
      %p104 = por %p102, %p103
      %p105 = scmp.ne.s32.totalorder %s93, %s94
      %p106 = scmp.eq.s32.totalorder %s21, 1
      %p107 = por %p105, %p106
      %p109 = scmp.ne.s32.totalorder %s94, %s108
      %p110 = scmp.eq.s32.totalorder %s21, 0
      %p111 = por %p109, %p110
      %s113 = sadd.s32 %s112, 1
      %p116 = scmp.eq.s32.totalorder %s15, 1
      %p117 = scmp.ne.s32.totalorder %s112, %s114
      %p118 = scmp.eq.s32.totalorder %s15, 0
      %p119 = por %p117, %p118
      %p120 = scmp.ne.s32.totalorder %s112, %s114
      %p121 = scmp.eq.s32.totalorder %s20, 1
      %p122 = por %p120, %p121
      %p123 = scmp.ne.s32.totalorder %s114, %s115
      %p124 = scmp.eq.s32.totalorder %s20, 0
      %p125 = por %p123, %p124
      %p126 = scmp.ne.s32.totalorder %s114, %s115
      %p127 = scmp.eq.s32.totalorder %s21, 1
      %p128 = por %p126, %p127
      %p130 = scmp.ne.s32.totalorder %s115, %s129
      %p131 = scmp.eq.s32.totalorder %s21, 0
      %p132 = por %p130, %p131
      %s134 = sadd.s32 %s133, 1
      %p137 = scmp.eq.s32.totalorder %s15, 1
      %p138 = scmp.ne.s32.totalorder %s133, %s135
      %p139 = scmp.eq.s32.totalorder %s15, 0
      %p140 = por %p138, %p139
      %p141 = scmp.ne.s32.totalorder %s133, %s135
      %p142 = scmp.eq.s32.totalorder %s20, 1
      %p143 = por %p141, %p142
      %p144 = scmp.ne.s32.totalorder %s135, %s136
      %p145 = scmp.eq.s32.totalorder %s20, 0
      %p146 = por %p144, %p145
      %p147 = scmp.ne.s32.totalorder %s135, %s136
      %p148 = scmp.eq.s32.totalorder %s21, 1
      %p149 = por %p147, %p148
      %p151 = scmp.ne.s32.totalorder %s136, %s150
      %p152 = scmp.eq.s32.totalorder %s21, 0
      %p153 = por %p151, %p152
      %s154 = ssub.s32 %s15, %s22
      %p155 = scmp.eq.s32.totalorder %s154, 0
      %s157 = sadd.s32 %s156, 1
      %s158 = scalar_select %p155, %s156, %s157
      %p161 = pneg %p155
      %p162 = scmp.eq.s32.totalorder %s15, 1
      %p163 = por %p161, %p162
      %p164 = scmp.ne.s32.totalorder %s156, %s159
      %p165 = scmp.eq.s32.totalorder %s15, 0
      %p166 = por %p164, %p165
      %p167 = scmp.ne.s32.totalorder %s156, %s159
      %p168 = scmp.eq.s32.totalorder %s20, 1
      %p169 = por %p167, %p168
      %p170 = scmp.ne.s32.totalorder %s159, %s160
      %p171 = scmp.eq.s32.totalorder %s20, 0
      %p172 = por %p170, %p171
      %p173 = scmp.ne.s32.totalorder %s159, %s160
      %p174 = scmp.eq.s32.totalorder %s21, 1
      %p175 = por %p173, %p174
      %p177 = scmp.ne.s32.totalorder %s160, %s176
      %p178 = scmp.eq.s32.totalorder %s21, 0
      %p179 = por %p177, %p178
      %p180 = scmp.le.s32.totalorder 1, %s15
      %p181 = scmp.lt.s32.totalorder %s15, 3
      %p182 = pnand %p180, %p181
      %p183 = pneg %p182
      // Predicated region
      $region9: #{rexnet_forward.1} parent=5 // pred_check
        _
      $region10: #{rexnet_forward.1} parent=5 // pred_check_branch
        %185 = sbr.rel (%p182) target = $region12
      $region11: #{rexnet_forward.1} parent=5 // pred_region
        %s186 = ssub.s32 %s15, 1
        // Predicated region
        $region13: #{rexnet_forward.1} parent=11 // pred_check
          %p187 = pneg %p62
        $region14: #{rexnet_forward.1} parent=11 // pred_check_branch
          %189 = sbr.rel (%p187) target = $region16
        $region15: #{rexnet_forward.1} parent=11 // pred_region
          _
        $region16: #{rexnet_forward.1} parent=11 // pred_fallthru
          _
        // Predicated region
        $region17: #{rexnet_forward.1} parent=11 // pred_check
          %p190 = pneg %p83
        $region18: #{rexnet_forward.1} parent=11 // pred_check_branch
          %192 = sbr.rel (%p190) target = $region20
        $region19: #{rexnet_forward.1} parent=11 // pred_region
          _
        $region20: #{rexnet_forward.1} parent=11 // pred_fallthru
          _
        // Predicated region
        $region21: #{rexnet_forward.1} parent=11 // pred_check
          %p193 = pneg %p104
        $region22: #{rexnet_forward.1} parent=11 // pred_check_branch
          %195 = sbr.rel (%p193) target = $region24
        $region23: #{rexnet_forward.1} parent=11 // pred_region
          _
        $region24: #{rexnet_forward.1} parent=11 // pred_fallthru
          _
        // Predicated region
        $region25: #{rexnet_forward.1} parent=11 // pred_check
          %p196 = pneg %p125
        $region26: #{rexnet_forward.1} parent=11 // pred_check_branch
          %198 = sbr.rel (%p196) target = $region28
        $region27: #{rexnet_forward.1} parent=11 // pred_region
          _
        $region28: #{rexnet_forward.1} parent=11 // pred_fallthru
          _
        // Predicated region
        $region29: #{rexnet_forward.1} parent=11 // pred_check
          %p199 = pneg %p146
        $region30: #{rexnet_forward.1} parent=11 // pred_check_branch
          %201 = sbr.rel (%p199) target = $region32
        $region31: #{rexnet_forward.1} parent=11 // pred_region
          _
        $region32: #{rexnet_forward.1} parent=11 // pred_fallthru
          _
      $region12: #{rexnet_forward.1} parent=5 // pred_fallthru
        _
      %p202 = scmp.lt.s32.totalorder %s15, 2
      // Predicated region
      $region33: #{rexnet_forward.1} parent=5 // pred_check
        %p203 = pneg %p202
      $region34: #{rexnet_forward.1} parent=5 // pred_check_branch
        %205 = sbr.rel (%p203) target = $region36
      $region35: #{rexnet_forward.1} parent=5 // pred_region
        // Predicated region
        $region37: #{rexnet_forward.1} parent=35 // pred_check
          %p206 = pneg %p35
        $region38: #{rexnet_forward.1} parent=35 // pred_check_branch
          %208 = sbr.rel (%p206) target = $region40
        $region39: #{rexnet_forward.1} parent=35 // pred_region
          %p209 = scmp.lt.s32.totalorder %s15, 1
          %s210 = scalar_select %p209, %s15, 1
          %s211 = smul.addr %s210, 2
          %s212 = scalar_lea.vmem %s0, %s211
        $region40: #{rexnet_forward.1} parent=35 // pred_fallthru
          _
      $region36: #{rexnet_forward.1} parent=5 // pred_fallthru
        _
      %p213 = scmp.le.s32.totalorder 1, %s15
      %p214 = scmp.lt.s32.totalorder %s15, 3
      %p215 = pnand %p213, %p214
      %p216 = pneg %p215
      // Predicated region
      $region41: #{rexnet_forward.1} parent=5 // pred_check
        _
      $region42: #{rexnet_forward.1} parent=5 // pred_check_branch
        %218 = sbr.rel (%p215) target = $region44
      $region43: #{rexnet_forward.1} parent=5 // pred_region
        %s219 = ssub.s32 %s15, 1
        %p220 = scmp.lt.s32.totalorder %s20, 1
        %s221 = scalar_select %p220, %s20, 1
        %s222 = smul.addr %s221, 2
        %s223 = scalar_lea.vmem %s0, %s222
        %p224 = pneg %p41
        %p225 = pneg %p38
        %p226 = pneg %p62
        %p227 = pneg %p59
        %p228 = pneg %p83
        %p229 = pneg %p80
        %p230 = pneg %p104
        %p231 = pneg %p101
        %p232 = pneg %p125
        %p233 = pneg %p122
        %p234 = pneg %p146
        %p235 = pneg %p143
        %p236 = pneg %p172
        %p237 = pneg %p169
        %s238 = sand.u32 %s159, 1
        %s239 = scalar_lea.sflag [#allocation3], %s238
        %s240 = sand.u32 %s159, 1
        %s241 = scalar_lea.vmem [#allocation2], %s240
        %p242 = scmp.lt.s32.totalorder %s20, 1
        %s243 = scalar_select %p242, %s20, 1
        %s244 = smul.addr %s243, 2
        %s245 = scalar_lea.vmem %s0, %s244
        %v247 = vld [vmem:[%s245] sm:$0x3]
        %249 = vst [vmem:[#allocation1] ss:$4 sm:$0xff] %v247
        %v250 = vld.sshfl [vmem:[#allocation1] sm:$0xff pattern:$0x73625140]
        %v252 = vrot.slane %v250, 7
        %253 = vrot.lane.b32.xlu0 %v252, 127
        %v254 = vpop.permute.xlu0 %253
        %255 = vst [vmem:[#allocation1] ss:$4 sm:$0xff] %v247
        %v256 = vld.sshfl [vmem:[#allocation1] sm:$0xff pattern:$0x73625140]
        %v257 = vshll.u32 %v256, 16
        %260 = vst [vmem:[#allocation1] ss:$4 sm:$0xff] %v247
        %v261 = vld.sshfl [vmem:[#allocation1] sm:$0xff pattern:$0x73625140]
        %v262 = vshrl.u32 %v261, 16
        %v264 = vrot.slane %v262, 7
        %265 = vst [vmem:[#allocation1] ss:$4 sm:$0xff] %v247
        %v266 = vld.sshfl [vmem:[#allocation1] sm:$0xff pattern:$0x73625140]
        %v267 = vshll.u32 %v266, 16
        %v269 = vrot.slane %v267, 7
        %270 = vrot.lane.b32.xlu0 %v269, 127
        %v271 = vpop.permute.xlu0 %270
        %273 = vst [vmem:[#allocation1] ss:$4 sm:$0xff] %v247
        %v274 = vld.sshfl [vmem:[#allocation1] sm:$0xff pattern:$0x73625140]
        %v276 = vrot.slane %v274, 5
        %277 = vrot.lane.b32.xlu0 %v276, 119
        %v278 = vpop.permute.xlu0 %277
        %279 = vst [vmem:[#allocation1] ss:$4 sm:$0xff] %v247
        %v280 = vld.sshfl [vmem:[#allocation1] sm:$0xff pattern:$0x73625140]
        %v282 = vrot.slane %v280, 5
        %283 = vrot.lane.b32.xlu0 %v282, 119
        %v284 = vpop.permute.xlu0 %283
        %s286 = scalar_lea.vmem [#allocation1], 2
        %287 = vst [vmem:[%s286] ss:$4 sm:$0xff] %v247
        %v288 = vld.sshfl [vmem:[#allocation1] sm:$0xff pattern:$0x73625140]
        %290 = vrot.lane.b32.xlu0 %v288, 118
        %v291 = vpop.permute.xlu0 %290
        %vm292 = vcmask 1040384
        %v294 = vsel %vm292, %v247, %v254
        %vm296 = vcmask 1041408
        %vm297 = vsmask.f32 1280
        %vm298 = vmand %vm296, %vm297
        %v299 = vsel %vm298, %v294, %v257
        %vm300 = vcmask 1041408
        %v303 = vsel %vm300, %v299, %v264
        %vm305 = vcmask 1042432
        %vm306 = vsmask.f32 2304
        %vm307 = vmand %vm305, %vm306
        %v308 = vsel %vm307, %v303, %v271
        %vm309 = vcmask 1042432
        %v312 = vsel %vm309, %v308, %v278
        %vm314 = vcmask 1043456
        %vm315 = vsmask.f32 3328
        %vm316 = vmand %vm314, %vm315
        %v317 = vsel %vm316, %v312, %v284
        %vm318 = vcmask 1043456
        %v321 = vsel %vm318, %v317, %v291
        %v322 = vld [vmem:[%s2] sm:$0xf]
        %v323 = vld [vmem:[%s2 + $0x4] sm:$0xf]
        %v324 = vld [vmem:[%s2 + $0x8] sm:$0xf]
        %v325 = vld [vmem:[%s2 + $0xc] sm:$0xf]
        %v330 = vunpack.c.l.b16 %v322
        %v331 = vunpack.c.l.b16 %v323
        %v332 = vunpack.c.l.b16 %v324
        %v333 = vunpack.c.l.b16 %v325
        %v334 = vpack.c.b16 %v331, %v330
        %v335 = vpack.c.b16 %v333, %v332
        %vm336 = vcmask 72704
        %v338 = vsel %vm336, %v334, 0
        %v341 = vsel %vm336, %v335, 0
        %vm343 = vcmask 1044480
        %v344 = vsel %vm318, 4294967295, 65535
        %v345 = vsel %vm343, %v344, 0
        %v346 = vand.u32 %v321, %v345
        %348 = vmatpush.bf16.msra.mxu0 0
        %349 = vmatpush.bf16.msra.mxu0 0
        %350 = vmatpush.bf16.msra.mxu0 0
        %351 = vmatpush.bf16.msra.mxu0 0
        %352 = vmatpush.bf16.msra.mxu0 0
        %353 = vmatpush.bf16.msra.mxu0 0
        %354 = vmatpush.bf16.msra.mxu0 0
        %355 = vmatpush.bf16.msra.mxu0 %v346
        %356 = vmatmul.bf16.gmra.mxu0 %v338
        %v357 = vpop.f32.mrf.mxu0
        %v358 = vadd.f32 0.0, %v357
        %v359 = vpop.f32.mrf.mxu0
        %v360 = vadd.f32 0.0, %v359
        %361 = vmatmul.bf16.gmra.mxu0 %v341
        %v362 = vpop.f32.mrf.mxu0
        %v363 = vadd.f32 0.0, %v362
        %v364 = vpop.f32.mrf.mxu0
        %v365 = vadd.f32 0.0, %v364
        %366 = vdwg.mxu0
        %v367 = vmul.f32 %v358, 0.5
        %v368 = vmul.f32 %v360, 0.5
        %v369 = vmul.f32 %v363, 0.5
        %v370 = vmul.f32 %v365, 0.5
        %v371 = vtanh.pop %v367
        %v372 = vtanh.pop %v368
        %v373 = vtanh.pop %v369
        %v374 = vtanh.pop %v370
        %v375 = vadd.f32 %v371, 1.0
        %v376 = vadd.f32 %v372, 1.0
        %v377 = vadd.f32 %v373, 1.0
        %v378 = vadd.f32 %v374, 1.0
        %v379 = vmul.f32 %v375, 0.5
        %v380 = vmul.f32 %v376, 0.5
        %v381 = vmul.f32 %v377, 0.5
        %v382 = vmul.f32 %v378, 0.5
        %v383 = vmul.f32 %v358, %v379
        %v384 = vmul.f32 %v360, %v380
        %v385 = vmul.f32 %v363, %v381
        %v386 = vmul.f32 %v365, %v382
        %v387 = vld [vmem:[%s1] sm:$0x1]
        %vm388 = vcmask 588800
        %v390 = vsel %vm388, %v387, 0
        %v393 = vsel %vm388, %v383, 0
        %v396 = vsel %vm388, %v384, 0
        %v399 = vsel %vm388, %v385, 0
        %v402 = vsel %vm388, %v386, 0
        %404 = vmatpush.xpose.msra.mxu0 0.0
        %405 = vmatpush.xpose.msra.mxu0 0.0
        %406 = vmatpush.xpose.msra.mxu0 0.0
        %407 = vmatpush.xpose.msra.mxu0 0.0
        %408 = vmatpush.xpose.msra.mxu0 0.0
        %409 = vmatpush.xpose.msra.mxu0 0.0
        %410 = vmatpush.xpose.msra.mxu0 0.0
        %411 = vmatpush.xpose.msra.mxu0 0.0
        %412 = vmatpush.xpose.msra.mxu0 0.0
        %413 = vmatpush.xpose.msra.mxu0 0.0
        %414 = vmatpush.xpose.msra.mxu0 0.0
        %415 = vmatpush.xpose.msra.mxu0 0.0
        %416 = vmatpush.xpose.msra.mxu0 %v402
        %417 = vmatpush.xpose.msra.mxu0 %v399
        %418 = vmatpush.xpose.msra.mxu0 %v396
        %419 = vmatpush.xpose.msra.mxu0 %v393
        %420 = vmatmul.f32.gmra.mxu0 %v390
        %v421 = vpop.f32.mrf.mxu0
        %v422 = vadd.f32 0.0, %v421
        %423 = vdwg.mxu0
        %v424 = vpack.c.bf16 %v422, %v422
        %v425 = vld [vmem:[%s3] sm:$0xff]
        %v426 = vld [vmem:[%s3 + $0x8] sm:$0xff]
        %v427 = vld [vmem:[%s3 + $0x10] sm:$0xff]
        %v428 = vld [vmem:[%s3 + $0x18] sm:$0xff]
        %v429 = vld [vmem:[%s3 + $0x20] sm:$0xff]
        %v430 = vld [vmem:[%s3 + $0x28] sm:$0xff]
        %v431 = vld [vmem:[%s3 + $0x30] sm:$0xff]
        %v432 = vld [vmem:[%s3 + $0x38] sm:$0xff]
        %v433 = vld [vmem:[%s3 + $0x40] sm:$0xff]
        %v434 = vld [vmem:[%s3 + $0x48] sm:$0xff]
        %v435 = vld [vmem:[%s3 + $0x50] sm:$0xff]
        %v436 = vld [vmem:[%s3 + $0x58] sm:$0xff]
        %v437 = vld [vmem:[%s3 + $0x60] sm:$0xff]
        %v438 = vld [vmem:[%s3 + $0x68] sm:$0xff]
        %v439 = vld [vmem:[%s3 + $0x70] sm:$0xff]
        %v440 = vld [vmem:[%s3 + $0x78] sm:$0xff]
        %v441 = vld [vmem:[%s3 + $0x80] sm:$0xff]
        %v442 = vld [vmem:[%s3 + $0x88] sm:$0xff]
        %v443 = vld [vmem:[%s3 + $0x90] sm:$0xff]
        %v444 = vld [vmem:[%s3 + $0x98] sm:$0xff]
        %v465 = vunpack.c.l.b16 %v425
        %v466 = vunpack.c.h.b16 %v425
        %v467 = vunpack.c.l.b16 %v426
        %v468 = vunpack.c.h.b16 %v426
        %v469 = vunpack.c.l.b16 %v427
        %v470 = vunpack.c.h.b16 %v427
        %v471 = vunpack.c.l.b16 %v428
        %v472 = vunpack.c.h.b16 %v428
        %v473 = vunpack.c.l.b16 %v429
        %v474 = vunpack.c.h.b16 %v429
        %v475 = vunpack.c.l.b16 %v430
        %v476 = vunpack.c.h.b16 %v430
        %v477 = vunpack.c.l.b16 %v431
        %v478 = vunpack.c.h.b16 %v431
        %v479 = vunpack.c.l.b16 %v432
        %v480 = vunpack.c.h.b16 %v432
        %v481 = vunpack.c.l.b16 %v433
        %v482 = vunpack.c.h.b16 %v433
        %v483 = vunpack.c.l.b16 %v434
        %v484 = vunpack.c.h.b16 %v434
        %v485 = vunpack.c.l.b16 %v435
        %v486 = vunpack.c.h.b16 %v435
        %v487 = vunpack.c.l.b16 %v436
        %v488 = vunpack.c.h.b16 %v436
        %v489 = vunpack.c.l.b16 %v437
        %v490 = vunpack.c.h.b16 %v437
        %v491 = vunpack.c.l.b16 %v438
        %v492 = vunpack.c.h.b16 %v438
        %v493 = vunpack.c.l.b16 %v439
        %v494 = vunpack.c.h.b16 %v439
        %v495 = vunpack.c.l.b16 %v440
        %v496 = vunpack.c.h.b16 %v440
        %v497 = vunpack.c.l.b16 %v441
        %v498 = vunpack.c.h.b16 %v441
        %v499 = vunpack.c.l.b16 %v442
        %v500 = vunpack.c.h.b16 %v442
        %v501 = vunpack.c.l.b16 %v443
        %v502 = vunpack.c.h.b16 %v443
        %v503 = vunpack.c.l.b16 %v444
        %v504 = vunpack.c.h.b16 %v444
        %v505 = vpack.c.b16 %v475, %v465
        %v506 = vpack.c.b16 %v476, %v466
        %v507 = vpack.c.b16 %v477, %v467
        %v508 = vpack.c.b16 %v478, %v468
        %v509 = vpack.c.b16 %v479, %v469
        %v510 = vpack.c.b16 %v480, %v470
        %v511 = vpack.c.b16 %v481, %v471
        %v512 = vpack.c.b16 %v482, %v472
        %v513 = vpack.c.b16 %v483, %v473
        %v514 = vpack.c.b16 %v484, %v474
        %v515 = vpack.c.b16 %v495, %v485
        %v516 = vpack.c.b16 %v496, %v486
        %v517 = vpack.c.b16 %v497, %v487
        %v518 = vpack.c.b16 %v498, %v488
        %v519 = vpack.c.b16 %v499, %v489
        %v520 = vpack.c.b16 %v500, %v490
        %v521 = vpack.c.b16 %v501, %v491
        %v522 = vpack.c.b16 %v502, %v492
        %v523 = vpack.c.b16 %v503, %v493
        %v524 = vpack.c.b16 %v504, %v494
        %vm545 = vcmask 261120
        %v547 = vsel %vm545, %v424, 0
        %549 = vmatpush.bf16.msra.mxu0 0
        %550 = vmatpush.bf16.msra.mxu0 0
        %551 = vmatpush.bf16.msra.mxu0 0
        %552 = vmatpush.bf16.msra.mxu0 0
        %553 = vmatpush.bf16.msra.mxu0 0
        %554 = vmatpush.bf16.msra.mxu0 0
        %555 = vmatpush.bf16.msra.mxu0 %v515
        %556 = vmatpush.bf16.msra.mxu0 %v505
        %557 = vmatmul.bf16.gmra.mxu0 %v547
        %v558 = vpop.f32.mrf.mxu0
        %v559 = vadd.f32 0.0, %v558
        %v560 = vpop.f32.mrf.mxu0
        %561 = vdwg.mxu0
        %562 = vmatpush.bf16.msra.mxu0 0
        %563 = vmatpush.bf16.msra.mxu0 0
        %564 = vmatpush.bf16.msra.mxu0 0
        %565 = vmatpush.bf16.msra.mxu0 0
        %566 = vmatpush.bf16.msra.mxu0 0
        %567 = vmatpush.bf16.msra.mxu0 0
        %568 = vmatpush.bf16.msra.mxu0 %v516
        %569 = vmatpush.bf16.msra.mxu0 %v506
        %570 = vmatmul.bf16.gmra.mxu0 %v547
        %v571 = vpop.f32.mrf.mxu0
        %v572 = vadd.f32 0.0, %v571
        %v573 = vpop.f32.mrf.mxu0
        %574 = vdwg.mxu0
        %575 = vmatpush.bf16.msra.mxu0 0
        %576 = vmatpush.bf16.msra.mxu0 0
        %577 = vmatpush.bf16.msra.mxu0 0
        %578 = vmatpush.bf16.msra.mxu0 0
        %579 = vmatpush.bf16.msra.mxu0 0
        %580 = vmatpush.bf16.msra.mxu0 0
        %581 = vmatpush.bf16.msra.mxu0 %v517
        %582 = vmatpush.bf16.msra.mxu0 %v507
        %583 = vmatmul.bf16.gmra.mxu0 %v547
        %v584 = vpop.f32.mrf.mxu0
        %v585 = vadd.f32 0.0, %v584
        %v586 = vpop.f32.mrf.mxu0
        %587 = vdwg.mxu0
        %588 = vmatpush.bf16.msra.mxu0 0
        %589 = vmatpush.bf16.msra.mxu0 0
        %590 = vmatpush.bf16.msra.mxu0 0
        %591 = vmatpush.bf16.msra.mxu0 0
        %592 = vmatpush.bf16.msra.mxu0 0
        %593 = vmatpush.bf16.msra.mxu0 0
        %594 = vmatpush.bf16.msra.mxu0 %v518
        %595 = vmatpush.bf16.msra.mxu0 %v508
        %596 = vmatmul.bf16.gmra.mxu0 %v547
        %v597 = vpop.f32.mrf.mxu0
        %v598 = vadd.f32 0.0, %v597
        %v599 = vpop.f32.mrf.mxu0
        %600 = vdwg.mxu0
        %601 = vmatpush.bf16.msra.mxu0 0
        %602 = vmatpush.bf16.msra.mxu0 0
        %603 = vmatpush.bf16.msra.mxu0 0
        %604 = vmatpush.bf16.msra.mxu0 0
        %605 = vmatpush.bf16.msra.mxu0 0
        %606 = vmatpush.bf16.msra.mxu0 0
        %607 = vmatpush.bf16.msra.mxu0 %v519
        %608 = vmatpush.bf16.msra.mxu0 %v509
        %609 = vmatmul.bf16.gmra.mxu0 %v547
        %v610 = vpop.f32.mrf.mxu0
        %v611 = vadd.f32 0.0, %v610
        %v612 = vpop.f32.mrf.mxu0
        %613 = vdwg.mxu0
        %614 = vmatpush.bf16.msra.mxu0 0
        %615 = vmatpush.bf16.msra.mxu0 0
        %616 = vmatpush.bf16.msra.mxu0 0
        %617 = vmatpush.bf16.msra.mxu0 0
        %618 = vmatpush.bf16.msra.mxu0 0
        %619 = vmatpush.bf16.msra.mxu0 0
        %620 = vmatpush.bf16.msra.mxu0 %v520
        %621 = vmatpush.bf16.msra.mxu0 %v510
        %622 = vmatmul.bf16.gmra.mxu0 %v547
        %v623 = vpop.f32.mrf.mxu0
        %v624 = vadd.f32 0.0, %v623
        %v625 = vpop.f32.mrf.mxu0
        %626 = vdwg.mxu0
        %627 = vmatpush.bf16.msra.mxu0 0
        %628 = vmatpush.bf16.msra.mxu0 0
        %629 = vmatpush.bf16.msra.mxu0 0
        %630 = vmatpush.bf16.msra.mxu0 0
        %631 = vmatpush.bf16.msra.mxu0 0
        %632 = vmatpush.bf16.msra.mxu0 0
        %633 = vmatpush.bf16.msra.mxu0 %v521
        %634 = vmatpush.bf16.msra.mxu0 %v511
        %635 = vmatmul.bf16.gmra.mxu0 %v547
        %v636 = vpop.f32.mrf.mxu0
        %v637 = vadd.f32 0.0, %v636
        %v638 = vpop.f32.mrf.mxu0
        %639 = vdwg.mxu0
        %640 = vmatpush.bf16.msra.mxu0 0
        %641 = vmatpush.bf16.msra.mxu0 0
        %642 = vmatpush.bf16.msra.mxu0 0
        %643 = vmatpush.bf16.msra.mxu0 0
        %644 = vmatpush.bf16.msra.mxu0 0
        %645 = vmatpush.bf16.msra.mxu0 0
        %646 = vmatpush.bf16.msra.mxu0 %v522
        %647 = vmatpush.bf16.msra.mxu0 %v512
        %648 = vmatmul.bf16.gmra.mxu0 %v547
        %v649 = vpop.f32.mrf.mxu0
        %v650 = vadd.f32 0.0, %v649
        %v651 = vpop.f32.mrf.mxu0
        %652 = vdwg.mxu0
        %653 = vmatpush.bf16.msra.mxu0 0
        %654 = vmatpush.bf16.msra.mxu0 0
        %655 = vmatpush.bf16.msra.mxu0 0
        %656 = vmatpush.bf16.msra.mxu0 0
        %657 = vmatpush.bf16.msra.mxu0 0
        %658 = vmatpush.bf16.msra.mxu0 0
        %659 = vmatpush.bf16.msra.mxu0 %v523
        %660 = vmatpush.bf16.msra.mxu0 %v513
        %661 = vmatmul.bf16.gmra.mxu0 %v547
        %v662 = vpop.f32.mrf.mxu0
        %v663 = vadd.f32 0.0, %v662
        %v664 = vpop.f32.mrf.mxu0
        %665 = vdwg.mxu0
        %666 = vmatpush.bf16.msra.mxu0 0
        %667 = vmatpush.bf16.msra.mxu0 0
        %668 = vmatpush.bf16.msra.mxu0 0
        %669 = vmatpush.bf16.msra.mxu0 0
        %670 = vmatpush.bf16.msra.mxu0 0
        %671 = vmatpush.bf16.msra.mxu0 0
        %672 = vmatpush.bf16.msra.mxu0 %v524
        %673 = vmatpush.bf16.msra.mxu0 %v514
        %674 = vmatmul.bf16.gmra.mxu0 %v547
        %v675 = vpop.f32.mrf.mxu0
        %v676 = vadd.f32 0.0, %v675
        %v677 = vpop.f32.mrf.mxu0
        %678 = vdwg.mxu0
        %v679 = vmul.f32 %v559, 0.5
        %v680 = vmul.f32 %v572, 0.5
        %v681 = vmul.f32 %v585, 0.5
        %v682 = vmul.f32 %v598, 0.5
        %v683 = vmul.f32 %v611, 0.5
        %v684 = vmul.f32 %v624, 0.5
        %v685 = vmul.f32 %v637, 0.5
        %v686 = vmul.f32 %v650, 0.5
        %v687 = vmul.f32 %v663, 0.5
        %v688 = vmul.f32 %v676, 0.5
        %v689 = vtanh.pop %v679
        %v690 = vtanh.pop %v680
        %v691 = vtanh.pop %v681
        %v692 = vtanh.pop %v682
        %v693 = vtanh.pop %v683
        %v694 = vtanh.pop %v684
        %v695 = vtanh.pop %v685
        %v696 = vtanh.pop %v686
        %v697 = vtanh.pop %v687
        %v698 = vtanh.pop %v688
        %v699 = vadd.f32 %v689, 1.0
        %v700 = vadd.f32 %v690, 1.0
        %v701 = vadd.f32 %v691, 1.0
        %v702 = vadd.f32 %v692, 1.0
        %v703 = vadd.f32 %v693, 1.0
        %v704 = vadd.f32 %v694, 1.0
        %v705 = vadd.f32 %v695, 1.0
        %v706 = vadd.f32 %v696, 1.0
        %v707 = vadd.f32 %v697, 1.0
        %v708 = vadd.f32 %v698, 1.0
        %v709 = vmul.f32 %v699, 0.5
        %v710 = vmul.f32 %v700, 0.5
        %v711 = vmul.f32 %v701, 0.5
        %v712 = vmul.f32 %v702, 0.5
        %v713 = vmul.f32 %v703, 0.5
        %v714 = vmul.f32 %v704, 0.5
        %v715 = vmul.f32 %v705, 0.5
        %v716 = vmul.f32 %v706, 0.5
        %v717 = vmul.f32 %v707, 0.5
        %v718 = vmul.f32 %v708, 0.5
        %v719 = vmul.f32 %v559, %v709
        %v720 = vmul.f32 %v572, %v710
        %v721 = vmul.f32 %v585, %v711
        %v722 = vmul.f32 %v598, %v712
        %v723 = vmul.f32 %v611, %v713
        %v724 = vmul.f32 %v624, %v714
        %v725 = vmul.f32 %v637, %v715
        %v726 = vmul.f32 %v650, %v716
        %v727 = vmul.f32 %v663, %v717
        %v728 = vmul.f32 %v676, %v718
        %v729 = vpack.c.bf16 %v719, %v719
        %v730 = vpack.c.bf16 %v720, %v720
        %v731 = vpack.c.bf16 %v721, %v721
        %v732 = vpack.c.bf16 %v722, %v722
        %v733 = vpack.c.bf16 %v723, %v723
        %v734 = vpack.c.bf16 %v724, %v724
        %v735 = vpack.c.bf16 %v725, %v725
        %v736 = vpack.c.bf16 %v726, %v726
        %v737 = vpack.c.bf16 %v727, %v727
        %v738 = vpack.c.bf16 %v728, %v728
        %v739 = vld [vmem:[%s4] sm:$0xf]
        %v740 = vld [vmem:[%s4 + $0x4] sm:$0xf]
        %v741 = vld [vmem:[%s4 + $0x8] sm:$0xf]
        %v742 = vld [vmem:[%s4 + $0xc] sm:$0xf]
        %v743 = vld [vmem:[%s4 + $0x10] sm:$0xf]
        %v744 = vld [vmem:[%s4 + $0x14] sm:$0xf]
        %v745 = vld [vmem:[%s4 + $0x18] sm:$0xf]
        %v746 = vld [vmem:[%s4 + $0x1c] sm:$0xf]
        %v747 = vld [vmem:[%s4 + $0x20] sm:$0xf]
        %v748 = vld [vmem:[%s4 + $0x24] sm:$0xf]
        %v749 = vld [vmem:[%s4 + $0x28] sm:$0xf]
        %v750 = vld [vmem:[%s4 + $0x2c] sm:$0xf]
        %v751 = vld [vmem:[%s4 + $0x30] sm:$0xf]
        %v752 = vld [vmem:[%s4 + $0x34] sm:$0xf]
        %v753 = vld [vmem:[%s4 + $0x38] sm:$0xf]
        %v754 = vld [vmem:[%s4 + $0x3c] sm:$0xf]
        %v755 = vld [vmem:[%s4 + $0x40] sm:$0xf]
        %v756 = vld [vmem:[%s4 + $0x44] sm:$0xf]
        %v757 = vld [vmem:[%s4 + $0x48] sm:$0xf]
        %v758 = vld [vmem:[%s4 + $0x4c] sm:$0xf]
        %v759 = vld [vmem:[%s4 + $0x50] sm:$0xf]
        %v760 = vld [vmem:[%s4 + $0x54] sm:$0xf]
        %v761 = vld [vmem:[%s4 + $0x58] sm:$0xf]
        %v762 = vld [vmem:[%s4 + $0x5c] sm:$0xf]
        %v763 = vld [vmem:[%s4 + $0x60] sm:$0xf]
        %v764 = vld [vmem:[%s4 + $0x64] sm:$0xf]
        %v765 = vld [vmem:[%s4 + $0x68] sm:$0xf]
        %v766 = vld [vmem:[%s4 + $0x6c] sm:$0xf]
        %v767 = vld [vmem:[%s4 + $0x70] sm:$0xf]
        %v768 = vld [vmem:[%s4 + $0x74] sm:$0xf]
        %v769 = vld [vmem:[%s4 + $0x78] sm:$0xf]
        %v770 = vld [vmem:[%s4 + $0x7c] sm:$0xf]
        %v771 = vld [vmem:[%s4 + $0x80] sm:$0xf]
        %v772 = vld [vmem:[%s4 + $0x84] sm:$0xf]
        %v773 = vld [vmem:[%s4 + $0x88] sm:$0xf]
        %v774 = vld [vmem:[%s4 + $0x8c] sm:$0xf]
        %v775 = vld [vmem:[%s4 + $0x90] sm:$0xf]
        %v776 = vld [vmem:[%s4 + $0x94] sm:$0xf]
        %v777 = vld [vmem:[%s4 + $0x98] sm:$0xf]
        %v778 = vld [vmem:[%s4 + $0x9c] sm:$0xf]
        %v779 = vld [vmem:[%s4 + $0xa0] sm:$0xf]
        %v780 = vld [vmem:[%s4 + $0xa4] sm:$0xf]
        %v781 = vld [vmem:[%s4 + $0xa8] sm:$0xf]
        %v782 = vld [vmem:[%s4 + $0xac] sm:$0xf]
        %v783 = vld [vmem:[%s4 + $0xb0] sm:$0xf]
        %v784 = vld [vmem:[%s4 + $0xb4] sm:$0xf]
        %v785 = vld [vmem:[%s4 + $0xb8] sm:$0xf]
        %v786 = vld [vmem:[%s4 + $0xbc] sm:$0xf]
        %v787 = vld [vmem:[%s4 + $0xc0] sm:$0xf]
        %v788 = vld [vmem:[%s4 + $0xc4] sm:$0xf]
        %v789 = vld [vmem:[%s4 + $0xc8] sm:$0xf]
        %v790 = vld [vmem:[%s4 + $0xcc] sm:$0xf]
        %v791 = vld [vmem:[%s4 + $0xd0] sm:$0xf]
        %v792 = vld [vmem:[%s4 + $0xd4] sm:$0xf]
        %v793 = vld [vmem:[%s4 + $0xd8] sm:$0xf]
        %v794 = vld [vmem:[%s4 + $0xdc] sm:$0xf]
        %v795 = vld [vmem:[%s4 + $0xe0] sm:$0xf]
        %v796 = vld [vmem:[%s4 + $0xe4] sm:$0xf]
        %v797 = vld [vmem:[%s4 + $0xe8] sm:$0xf]
        %v798 = vld [vmem:[%s4 + $0xec] sm:$0xf]
        %v799 = vld [vmem:[%s4 + $0xf0] sm:$0xf]
        %v800 = vld [vmem:[%s4 + $0xf4] sm:$0xf]
        %v801 = vld [vmem:[%s4 + $0xf8] sm:$0xf]
        %v802 = vld [vmem:[%s4 + $0xfc] sm:$0xf]
        %v803 = vld [vmem:[%s4 + $0x100] sm:$0xf]
        %v804 = vld [vmem:[%s4 + $0x104] sm:$0xf]
        %v805 = vld [vmem:[%s4 + $0x108] sm:$0xf]
        %v806 = vld [vmem:[%s4 + $0x10c] sm:$0xf]
        %v807 = vld [vmem:[%s4 + $0x110] sm:$0xf]
        %v808 = vld [vmem:[%s4 + $0x114] sm:$0xf]
        %v809 = vld [vmem:[%s4 + $0x118] sm:$0xf]
        %v810 = vld [vmem:[%s4 + $0x11c] sm:$0xf]
        %v811 = vld [vmem:[%s4 + $0x120] sm:$0xf]
        %v812 = vld [vmem:[%s4 + $0x124] sm:$0xf]
        %v813 = vld [vmem:[%s4 + $0x128] sm:$0xf]
        %v814 = vld [vmem:[%s4 + $0x12c] sm:$0xf]
        %v815 = vld [vmem:[%s4 + $0x130] sm:$0xf]
        %v816 = vld [vmem:[%s4 + $0x134] sm:$0xf]
        %v817 = vld [vmem:[%s4 + $0x138] sm:$0xf]
        %v818 = vld [vmem:[%s4 + $0x13c] sm:$0xf]
        %v819 = vld [vmem:[%s4 + $0x140] sm:$0xf]
        %v820 = vld [vmem:[%s4 + $0x144] sm:$0xf]
        %v821 = vld [vmem:[%s4 + $0x148] sm:$0xf]
        %v822 = vld [vmem:[%s4 + $0x14c] sm:$0xf]
        %v823 = vld [vmem:[%s4 + $0x150] sm:$0xf]
        %v824 = vld [vmem:[%s4 + $0x154] sm:$0xf]
        %v825 = vld [vmem:[%s4 + $0x158] sm:$0xf]
        %v826 = vld [vmem:[%s4 + $0x15c] sm:$0xf]
        %v827 = vld [vmem:[%s4 + $0x160] sm:$0xf]
        %v828 = vld [vmem:[%s4 + $0x164] sm:$0xf]
        %v829 = vld [vmem:[%s4 + $0x168] sm:$0xf]
        %v830 = vld [vmem:[%s4 + $0x16c] sm:$0xf]
        %v831 = vld [vmem:[%s4 + $0x170] sm:$0xf]
        %v832 = vld [vmem:[%s4 + $0x174] sm:$0xf]
        %v833 = vld [vmem:[%s4 + $0x178] sm:$0xf]
        %v834 = vld [vmem:[%s4 + $0x17c] sm:$0xf]
        %v835 = vld [vmem:[%s4 + $0x180] sm:$0xf]
        %v836 = vld [vmem:[%s4 + $0x184] sm:$0xf]
        %v837 = vld [vmem:[%s4 + $0x188] sm:$0xf]
        %v838 = vld [vmem:[%s4 + $0x18c] sm:$0xf]
        %v839 = vld [vmem:[%s4 + $0x190] sm:$0xf]
        %v840 = vld [vmem:[%s4 + $0x194] sm:$0xf]
        %v841 = vld [vmem:[%s4 + $0x198] sm:$0xf]
        %v842 = vld [vmem:[%s4 + $0x19c] sm:$0xf]
        %v843 = vld [vmem:[%s4 + $0x1a0] sm:$0xf]
        %v844 = vld [vmem:[%s4 + $0x1a4] sm:$0xf]
        %v845 = vld [vmem:[%s4 + $0x1a8] sm:$0xf]
        %v846 = vld [vmem:[%s4 + $0x1ac] sm:$0xf]
        %v847 = vld [vmem:[%s4 + $0x1b0] sm:$0xf]
        %v848 = vld [vmem:[%s4 + $0x1b4] sm:$0xf]
        %v849 = vld [vmem:[%s4 + $0x1b8] sm:$0xf]
        %v850 = vld [vmem:[%s4 + $0x1bc] sm:$0xf]
        %v851 = vld [vmem:[%s4 + $0x1c0] sm:$0xf]
        %v852 = vld [vmem:[%s4 + $0x1c4] sm:$0xf]
        %v853 = vld [vmem:[%s4 + $0x1c8] sm:$0xf]
        %v854 = vld [vmem:[%s4 + $0x1cc] sm:$0xf]
        %v855 = vld [vmem:[%s4 + $0x1d0] sm:$0xf]
        %v856 = vld [vmem:[%s4 + $0x1d4] sm:$0xf]
        %v857 = vld [vmem:[%s4 + $0x1d8] sm:$0xf]
        %v858 = vld [vmem:[%s4 + $0x1dc] sm:$0xf]
        %v859 = vld [vmem:[%s4 + $0x1e0] sm:$0xf]
        %v860 = vld [vmem:[%s4 + $0x1e4] sm:$0xf]
        %v861 = vld [vmem:[%s4 + $0x1e8] sm:$0xf]
        %v862 = vld [vmem:[%s4 + $0x1ec] sm:$0xf]
        %v863 = vld [vmem:[%s4 + $0x1f0] sm:$0xf]
        %v864 = vld [vmem:[%s4 + $0x1f4] sm:$0xf]
        %v865 = vld [vmem:[%s4 + $0x1f8] sm:$0xf]
        %v866 = vld [vmem:[%s4 + $0x1fc] sm:$0xf]
        %v867 = vld [vmem:[%s4 + $0x200] sm:$0xf]
        %v868 = vld [vmem:[%s4 + $0x204] sm:$0xf]
        %v869 = vld [vmem:[%s4 + $0x208] sm:$0xf]
        %v870 = vld [vmem:[%s4 + $0x20c] sm:$0xf]
        %v871 = vld [vmem:[%s4 + $0x210] sm:$0xf]
        %v872 = vld [vmem:[%s4 + $0x214] sm:$0xf]
        %v873 = vld [vmem:[%s4 + $0x218] sm:$0xf]
        %v874 = vld [vmem:[%s4 + $0x21c] sm:$0xf]
        %v875 = vld [vmem:[%s4 + $0x220] sm:$0xf]
        %v876 = vld [vmem:[%s4 + $0x224] sm:$0xf]
        %v877 = vld [vmem:[%s4 + $0x228] sm:$0xf]
        %v878 = vld [vmem:[%s4 + $0x22c] sm:$0xf]
        %v879 = vld [vmem:[%s4 + $0x230] sm:$0xf]
        %v880 = vld [vmem:[%s4 + $0x234] sm:$0xf]
        %v881 = vld [vmem:[%s4 + $0x238] sm:$0xf]
        %v882 = vld [vmem:[%s4 + $0x23c] sm:$0xf]
        %v883 = vld [vmem:[%s4 + $0x240] sm:$0xf]
        %v884 = vld [vmem:[%s4 + $0x244] sm:$0xf]
        %v885 = vld [vmem:[%s4 + $0x248] sm:$0xf]
        %v886 = vld [vmem:[%s4 + $0x24c] sm:$0xf]
        %v887 = vld [vmem:[%s4 + $0x250] sm:$0xf]
        %v888 = vld [vmem:[%s4 + $0x254] sm:$0xf]
        %v889 = vld [vmem:[%s4 + $0x258] sm:$0xf]
        %v890 = vld [vmem:[%s4 + $0x25c] sm:$0xf]
        %v891 = vld [vmem:[%s4 + $0x260] sm:$0xf]
        %v892 = vld [vmem:[%s4 + $0x264] sm:$0xf]
        %v893 = vld [vmem:[%s4 + $0x268] sm:$0xf]
        %v894 = vld [vmem:[%s4 + $0x26c] sm:$0xf]
        %v895 = vld [vmem:[%s4 + $0x270] sm:$0xf]
        %v896 = vld [vmem:[%s4 + $0x274] sm:$0xf]
        %v897 = vld [vmem:[%s4 + $0x278] sm:$0xf]
        %v898 = vld [vmem:[%s4 + $0x27c] sm:$0xf]
        %v899 = vld [vmem:[%s5] sm:$0x1]
        %v1060 = vunpack.c.l.b16 %v739
        %v1061 = vunpack.c.l.b16 %v740
        %v1062 = vunpack.c.l.b16 %v741
        %v1063 = vunpack.c.l.b16 %v742
        %v1064 = vunpack.c.l.b16 %v743
        %v1065 = vunpack.c.l.b16 %v744
        %v1066 = vunpack.c.l.b16 %v745
        %v1067 = vunpack.c.l.b16 %v746
        %v1068 = vunpack.c.l.b16 %v747
        %v1069 = vunpack.c.l.b16 %v748
        %v1070 = vunpack.c.l.b16 %v749
        %v1071 = vunpack.c.l.b16 %v750
        %v1072 = vunpack.c.l.b16 %v751
        %v1073 = vunpack.c.l.b16 %v752
        %v1074 = vunpack.c.l.b16 %v753
        %v1075 = vunpack.c.l.b16 %v754
        %v1076 = vunpack.c.l.b16 %v755
        %v1077 = vunpack.c.l.b16 %v756
        %v1078 = vunpack.c.l.b16 %v757
        %v1079 = vunpack.c.l.b16 %v758
        %v1080 = vunpack.c.l.b16 %v759
        %v1081 = vunpack.c.l.b16 %v760
        %v1082 = vunpack.c.l.b16 %v761
        %v1083 = vunpack.c.l.b16 %v762
        %v1084 = vunpack.c.l.b16 %v763
        %v1085 = vunpack.c.l.b16 %v764
        %v1086 = vunpack.c.l.b16 %v765
        %v1087 = vunpack.c.l.b16 %v766
        %v1088 = vunpack.c.l.b16 %v767
        %v1089 = vunpack.c.l.b16 %v768
        %v1090 = vunpack.c.l.b16 %v769
        %v1091 = vunpack.c.l.b16 %v770
        %v1092 = vunpack.c.l.b16 %v771
        %v1093 = vunpack.c.l.b16 %v772
        %v1094 = vunpack.c.l.b16 %v773
        %v1095 = vunpack.c.l.b16 %v774
        %v1096 = vunpack.c.l.b16 %v775
        %v1097 = vunpack.c.l.b16 %v776
        %v1098 = vunpack.c.l.b16 %v777
        %v1099 = vunpack.c.l.b16 %v778
        %v1100 = vunpack.c.l.b16 %v779
        %v1101 = vunpack.c.l.b16 %v780
        %v1102 = vunpack.c.l.b16 %v781
        %v1103 = vunpack.c.l.b16 %v782
        %v1104 = vunpack.c.l.b16 %v783
        %v1105 = vunpack.c.l.b16 %v784
        %v1106 = vunpack.c.l.b16 %v785
        %v1107 = vunpack.c.l.b16 %v786
        %v1108 = vunpack.c.l.b16 %v787
        %v1109 = vunpack.c.l.b16 %v788
        %v1110 = vunpack.c.l.b16 %v789
        %v1111 = vunpack.c.l.b16 %v790
        %v1112 = vunpack.c.l.b16 %v791
        %v1113 = vunpack.c.l.b16 %v792
        %v1114 = vunpack.c.l.b16 %v793
        %v1115 = vunpack.c.l.b16 %v794
        %v1116 = vunpack.c.l.b16 %v795
        %v1117 = vunpack.c.l.b16 %v796
        %v1118 = vunpack.c.l.b16 %v797
        %v1119 = vunpack.c.l.b16 %v798
        %v1120 = vunpack.c.l.b16 %v799
        %v1121 = vunpack.c.l.b16 %v800
        %v1122 = vunpack.c.l.b16 %v801
        %v1123 = vunpack.c.l.b16 %v802
        %v1124 = vunpack.c.l.b16 %v803
        %v1125 = vunpack.c.l.b16 %v804
        %v1126 = vunpack.c.l.b16 %v805
        %v1127 = vunpack.c.l.b16 %v806
        %v1128 = vunpack.c.l.b16 %v807
        %v1129 = vunpack.c.l.b16 %v808
        %v1130 = vunpack.c.l.b16 %v809
        %v1131 = vunpack.c.l.b16 %v810
        %v1132 = vunpack.c.l.b16 %v811
        %v1133 = vunpack.c.l.b16 %v812
        %v1134 = vunpack.c.l.b16 %v813
        %v1135 = vunpack.c.l.b16 %v814
        %v1136 = vunpack.c.l.b16 %v815
        %v1137 = vunpack.c.l.b16 %v816
        %v1138 = vunpack.c.l.b16 %v817
        %v1139 = vunpack.c.l.b16 %v818
        %v1140 = vunpack.c.l.b16 %v819
        %v1141 = vunpack.c.l.b16 %v820
        %v1142 = vunpack.c.l.b16 %v821
        %v1143 = vunpack.c.l.b16 %v822
        %v1144 = vunpack.c.l.b16 %v823
        %v1145 = vunpack.c.l.b16 %v824
        %v1146 = vunpack.c.l.b16 %v825
        %v1147 = vunpack.c.l.b16 %v826
        %v1148 = vunpack.c.l.b16 %v827
        %v1149 = vunpack.c.l.b16 %v828
        %v1150 = vunpack.c.l.b16 %v829
        %v1151 = vunpack.c.l.b16 %v830
        %v1152 = vunpack.c.l.b16 %v831
        %v1153 = vunpack.c.l.b16 %v832
        %v1154 = vunpack.c.l.b16 %v833
        %v1155 = vunpack.c.l.b16 %v834
        %v1156 = vunpack.c.l.b16 %v835
        %v1157 = vunpack.c.l.b16 %v836
        %v1158 = vunpack.c.l.b16 %v837
        %v1159 = vunpack.c.l.b16 %v838
        %v1160 = vunpack.c.l.b16 %v839
        %v1161 = vunpack.c.l.b16 %v840
        %v1162 = vunpack.c.l.b16 %v841
        %v1163 = vunpack.c.l.b16 %v842
        %v1164 = vunpack.c.l.b16 %v843
        %v1165 = vunpack.c.l.b16 %v844
        %v1166 = vunpack.c.l.b16 %v845
        %v1167 = vunpack.c.l.b16 %v846
        %v1168 = vunpack.c.l.b16 %v847
        %v1169 = vunpack.c.l.b16 %v848
        %v1170 = vunpack.c.l.b16 %v849
        %v1171 = vunpack.c.l.b16 %v850
        %v1172 = vunpack.c.l.b16 %v851
        %v1173 = vunpack.c.l.b16 %v852
        %v1174 = vunpack.c.l.b16 %v853
        %v1175 = vunpack.c.l.b16 %v854
        %v1176 = vunpack.c.l.b16 %v855
        %v1177 = vunpack.c.l.b16 %v856
        %v1178 = vunpack.c.l.b16 %v857
        %v1179 = vunpack.c.l.b16 %v858
        %v1180 = vunpack.c.l.b16 %v859
        %v1181 = vunpack.c.l.b16 %v860
        %v1182 = vunpack.c.l.b16 %v861
        %v1183 = vunpack.c.l.b16 %v862
        %v1184 = vunpack.c.l.b16 %v863
        %v1185 = vunpack.c.l.b16 %v864
        %v1186 = vunpack.c.l.b16 %v865
        %v1187 = vunpack.c.l.b16 %v866
        %v1188 = vunpack.c.l.b16 %v867
        %v1189 = vunpack.c.l.b16 %v868
        %v1190 = vunpack.c.l.b16 %v869
        %v1191 = vunpack.c.l.b16 %v870
        %v1192 = vunpack.c.l.b16 %v871
        %v1193 = vunpack.c.l.b16 %v872
        %v1194 = vunpack.c.l.b16 %v873
        %v1195 = vunpack.c.l.b16 %v874
        %v1196 = vunpack.c.l.b16 %v875
        %v1197 = vunpack.c.l.b16 %v876
        %v1198 = vunpack.c.l.b16 %v877
        %v1199 = vunpack.c.l.b16 %v878
        %v1200 = vunpack.c.l.b16 %v879
        %v1201 = vunpack.c.l.b16 %v880
        %v1202 = vunpack.c.l.b16 %v881
        %v1203 = vunpack.c.l.b16 %v882
        %v1204 = vunpack.c.l.b16 %v883
        %v1205 = vunpack.c.l.b16 %v884
        %v1206 = vunpack.c.l.b16 %v885
        %v1207 = vunpack.c.l.b16 %v886
        %v1208 = vunpack.c.l.b16 %v887
        %v1209 = vunpack.c.l.b16 %v888
        %v1210 = vunpack.c.l.b16 %v889
        %v1211 = vunpack.c.l.b16 %v890
        %v1212 = vunpack.c.l.b16 %v891
        %v1213 = vunpack.c.l.b16 %v892
        %v1214 = vunpack.c.l.b16 %v893
        %v1215 = vunpack.c.l.b16 %v894
        %v1216 = vunpack.c.l.b16 %v895
        %v1217 = vunpack.c.l.b16 %v896
        %v1218 = vunpack.c.l.b16 %v897
        %v1219 = vunpack.c.l.b16 %v898
        %v1220 = vpack.c.b16 %v1061, %v1060
        %v1221 = vpack.c.b16 %v1063, %v1062
        %v1222 = vpack.c.b16 %v1065, %v1064
        %v1223 = vpack.c.b16 %v1067, %v1066
        %v1224 = vpack.c.b16 %v1069, %v1068
        %v1225 = vpack.c.b16 %v1071, %v1070
        %v1226 = vpack.c.b16 %v1073, %v1072
        %v1227 = vpack.c.b16 %v1075, %v1074
        %v1228 = vpack.c.b16 %v1077, %v1076
        %v1229 = vpack.c.b16 %v1079, %v1078
        %v1230 = vpack.c.b16 %v1081, %v1080
        %v1231 = vpack.c.b16 %v1083, %v1082
        %v1232 = vpack.c.b16 %v1085, %v1084
        %v1233 = vpack.c.b16 %v1087, %v1086
        %v1234 = vpack.c.b16 %v1089, %v1088
        %v1235 = vpack.c.b16 %v1091, %v1090
        %v1236 = vpack.c.b16 %v1093, %v1092
        %v1237 = vpack.c.b16 %v1095, %v1094
        %v1238 = vpack.c.b16 %v1097, %v1096
        %v1239 = vpack.c.b16 %v1099, %v1098
        %v1240 = vpack.c.b16 %v1101, %v1100
        %v1241 = vpack.c.b16 %v1103, %v1102
        %v1242 = vpack.c.b16 %v1105, %v1104
        %v1243 = vpack.c.b16 %v1107, %v1106
        %v1244 = vpack.c.b16 %v1109, %v1108
        %v1245 = vpack.c.b16 %v1111, %v1110
        %v1246 = vpack.c.b16 %v1113, %v1112
        %v1247 = vpack.c.b16 %v1115, %v1114
        %v1248 = vpack.c.b16 %v1117, %v1116
        %v1249 = vpack.c.b16 %v1119, %v1118
        %v1250 = vpack.c.b16 %v1121, %v1120
        %v1251 = vpack.c.b16 %v1123, %v1122
        %v1252 = vpack.c.b16 %v1125, %v1124
        %v1253 = vpack.c.b16 %v1127, %v1126
        %v1254 = vpack.c.b16 %v1129, %v1128
        %v1255 = vpack.c.b16 %v1131, %v1130
        %v1256 = vpack.c.b16 %v1133, %v1132
        %v1257 = vpack.c.b16 %v1135, %v1134
        %v1258 = vpack.c.b16 %v1137, %v1136
        %v1259 = vpack.c.b16 %v1139, %v1138
        %v1260 = vpack.c.b16 %v1141, %v1140
        %v1261 = vpack.c.b16 %v1143, %v1142
        %v1262 = vpack.c.b16 %v1145, %v1144
        %v1263 = vpack.c.b16 %v1147, %v1146
        %v1264 = vpack.c.b16 %v1149, %v1148
        %v1265 = vpack.c.b16 %v1151, %v1150
        %v1266 = vpack.c.b16 %v1153, %v1152
        %v1267 = vpack.c.b16 %v1155, %v1154
        %v1268 = vpack.c.b16 %v1157, %v1156
        %v1269 = vpack.c.b16 %v1159, %v1158
        %v1270 = vpack.c.b16 %v1161, %v1160
        %v1271 = vpack.c.b16 %v1163, %v1162
        %v1272 = vpack.c.b16 %v1165, %v1164
        %v1273 = vpack.c.b16 %v1167, %v1166
        %v1274 = vpack.c.b16 %v1169, %v1168
        %v1275 = vpack.c.b16 %v1171, %v1170
        %v1276 = vpack.c.b16 %v1173, %v1172
        %v1277 = vpack.c.b16 %v1175, %v1174
        %v1278 = vpack.c.b16 %v1177, %v1176
        %v1279 = vpack.c.b16 %v1179, %v1178
        %v1280 = vpack.c.b16 %v1181, %v1180
        %v1281 = vpack.c.b16 %v1183, %v1182
        %v1282 = vpack.c.b16 %v1185, %v1184
        %v1283 = vpack.c.b16 %v1187, %v1186
        %v1284 = vpack.c.b16 %v1189, %v1188
        %v1285 = vpack.c.b16 %v1191, %v1190
        %v1286 = vpack.c.b16 %v1193, %v1192
        %v1287 = vpack.c.b16 %v1195, %v1194
        %v1288 = vpack.c.b16 %v1197, %v1196
        %v1289 = vpack.c.b16 %v1199, %v1198
        %v1290 = vpack.c.b16 %v1201, %v1200
        %v1291 = vpack.c.b16 %v1203, %v1202
        %v1292 = vpack.c.b16 %v1205, %v1204
        %v1293 = vpack.c.b16 %v1207, %v1206
        %v1294 = vpack.c.b16 %v1209, %v1208
        %v1295 = vpack.c.b16 %v1211, %v1210
        %v1296 = vpack.c.b16 %v1213, %v1212
        %v1297 = vpack.c.b16 %v1215, %v1214
        %v1298 = vpack.c.b16 %v1217, %v1216
        %v1299 = vpack.c.b16 %v1219, %v1218
        %1380 = vmatpush.bf16.msra.mxu0 %v1227
        %1381 = vmatpush.bf16.msra.mxu0 %v1226
        %1382 = vmatpush.bf16.msra.mxu0 %v1225
        %1383 = vmatpush.bf16.msra.mxu0 %v1224
        %1384 = vmatpush.bf16.msra.mxu0 %v1223
        %1385 = vmatpush.bf16.msra.mxu0 %v1222
        %1386 = vmatpush.bf16.msra.mxu0 %v1221
        %1387 = vmatpush.bf16.msra.mxu0 %v1220
        %1388 = vmatmul.bf16.gmra.mxu0 %v729
        %v1389 = vpop.f32.mrf.mxu0
        %v1390 = vadd.f32 %v899, %v1389
        %v1391 = vpop.f32.mrf.mxu0
        %1392 = vdwg.mxu0
        %1393 = vmatpush.bf16.msra.mxu0 %v1235
        %1394 = vmatpush.bf16.msra.mxu0 %v1234
        %1395 = vmatpush.bf16.msra.mxu0 %v1233
        %1396 = vmatpush.bf16.msra.mxu0 %v1232
        %1397 = vmatpush.bf16.msra.mxu0 %v1231
        %1398 = vmatpush.bf16.msra.mxu0 %v1230
        %1399 = vmatpush.bf16.msra.mxu0 %v1229
        %1400 = vmatpush.bf16.msra.mxu0 %v1228
        %1401 = vmatmul.bf16.gmra.mxu0 %v730
        %v1402 = vpop.f32.mrf.mxu0
        %v1403 = vadd.f32 %v1390, %v1402
        %v1404 = vpop.f32.mrf.mxu0
        %1405 = vdwg.mxu0
        %1406 = vmatpush.bf16.msra.mxu0 %v1243
        %1407 = vmatpush.bf16.msra.mxu0 %v1242
        %1408 = vmatpush.bf16.msra.mxu0 %v1241
        %1409 = vmatpush.bf16.msra.mxu0 %v1240
        %1410 = vmatpush.bf16.msra.mxu0 %v1239
        %1411 = vmatpush.bf16.msra.mxu0 %v1238
        %1412 = vmatpush.bf16.msra.mxu0 %v1237
        %1413 = vmatpush.bf16.msra.mxu0 %v1236
        %1414 = vmatmul.bf16.gmra.mxu0 %v731
        %v1415 = vpop.f32.mrf.mxu0
        %v1416 = vadd.f32 %v1403, %v1415
        %v1417 = vpop.f32.mrf.mxu0
        %1418 = vdwg.mxu0
        %1419 = vmatpush.bf16.msra.mxu0 %v1251
        %1420 = vmatpush.bf16.msra.mxu0 %v1250
        %1421 = vmatpush.bf16.msra.mxu0 %v1249
        %1422 = vmatpush.bf16.msra.mxu0 %v1248
        %1423 = vmatpush.bf16.msra.mxu0 %v1247
        %1424 = vmatpush.bf16.msra.mxu0 %v1246
        %1425 = vmatpush.bf16.msra.mxu0 %v1245
        %1426 = vmatpush.bf16.msra.mxu0 %v1244
        %1427 = vmatmul.bf16.gmra.mxu0 %v732
        %v1428 = vpop.f32.mrf.mxu0
        %v1429 = vadd.f32 %v1416, %v1428
        %v1430 = vpop.f32.mrf.mxu0
        %1431 = vdwg.mxu0
        %1432 = vmatpush.bf16.msra.mxu0 %v1259
        %1433 = vmatpush.bf16.msra.mxu0 %v1258
        %1434 = vmatpush.bf16.msra.mxu0 %v1257
        %1435 = vmatpush.bf16.msra.mxu0 %v1256
        %1436 = vmatpush.bf16.msra.mxu0 %v1255
        %1437 = vmatpush.bf16.msra.mxu0 %v1254
        %1438 = vmatpush.bf16.msra.mxu0 %v1253
        %1439 = vmatpush.bf16.msra.mxu0 %v1252
        %1440 = vmatmul.bf16.gmra.mxu0 %v733
        %v1441 = vpop.f32.mrf.mxu0
        %v1442 = vadd.f32 %v1429, %v1441
        %v1443 = vpop.f32.mrf.mxu0
        %1444 = vdwg.mxu0
        %1445 = vmatpush.bf16.msra.mxu0 %v1267
        %1446 = vmatpush.bf16.msra.mxu0 %v1266
        %1447 = vmatpush.bf16.msra.mxu0 %v1265
        %1448 = vmatpush.bf16.msra.mxu0 %v1264
        %1449 = vmatpush.bf16.msra.mxu0 %v1263
        %1450 = vmatpush.bf16.msra.mxu0 %v1262
        %1451 = vmatpush.bf16.msra.mxu0 %v1261
        %1452 = vmatpush.bf16.msra.mxu0 %v1260
        %1453 = vmatmul.bf16.gmra.mxu0 %v734
        %v1454 = vpop.f32.mrf.mxu0
        %v1455 = vadd.f32 %v1442, %v1454
        %v1456 = vpop.f32.mrf.mxu0
        %1457 = vdwg.mxu0
        %1458 = vmatpush.bf16.msra.mxu0 %v1275
        %1459 = vmatpush.bf16.msra.mxu0 %v1274
        %1460 = vmatpush.bf16.msra.mxu0 %v1273
        %1461 = vmatpush.bf16.msra.mxu0 %v1272
        %1462 = vmatpush.bf16.msra.mxu0 %v1271
        %1463 = vmatpush.bf16.msra.mxu0 %v1270
        %1464 = vmatpush.bf16.msra.mxu0 %v1269
        %1465 = vmatpush.bf16.msra.mxu0 %v1268
        %1466 = vmatmul.bf16.gmra.mxu0 %v735
        %v1467 = vpop.f32.mrf.mxu0
        %v1468 = vadd.f32 %v1455, %v1467
        %v1469 = vpop.f32.mrf.mxu0
        %1470 = vdwg.mxu0
        %1471 = vmatpush.bf16.msra.mxu0 %v1283
        %1472 = vmatpush.bf16.msra.mxu0 %v1282
        %1473 = vmatpush.bf16.msra.mxu0 %v1281
        %1474 = vmatpush.bf16.msra.mxu0 %v1280
        %1475 = vmatpush.bf16.msra.mxu0 %v1279
        %1476 = vmatpush.bf16.msra.mxu0 %v1278
        %1477 = vmatpush.bf16.msra.mxu0 %v1277
        %1478 = vmatpush.bf16.msra.mxu0 %v1276
        %1479 = vmatmul.bf16.gmra.mxu0 %v736
        %v1480 = vpop.f32.mrf.mxu0
        %v1481 = vadd.f32 %v1468, %v1480
        %v1482 = vpop.f32.mrf.mxu0
        %1483 = vdwg.mxu0
        %1484 = vmatpush.bf16.msra.mxu0 %v1291
        %1485 = vmatpush.bf16.msra.mxu0 %v1290
        %1486 = vmatpush.bf16.msra.mxu0 %v1289
        %1487 = vmatpush.bf16.msra.mxu0 %v1288
        %1488 = vmatpush.bf16.msra.mxu0 %v1287
        %1489 = vmatpush.bf16.msra.mxu0 %v1286
        %1490 = vmatpush.bf16.msra.mxu0 %v1285
        %1491 = vmatpush.bf16.msra.mxu0 %v1284
        %1492 = vmatmul.bf16.gmra.mxu0 %v737
        %v1493 = vpop.f32.mrf.mxu0
        %v1494 = vadd.f32 %v1481, %v1493
        %v1495 = vpop.f32.mrf.mxu0
        %1496 = vdwg.mxu0
        %1497 = vmatpush.bf16.msra.mxu0 %v1299
        %1498 = vmatpush.bf16.msra.mxu0 %v1298
        %1499 = vmatpush.bf16.msra.mxu0 %v1297
        %1500 = vmatpush.bf16.msra.mxu0 %v1296
        %1501 = vmatpush.bf16.msra.mxu0 %v1295
        %1502 = vmatpush.bf16.msra.mxu0 %v1294
        %1503 = vmatpush.bf16.msra.mxu0 %v1293
        %1504 = vmatpush.bf16.msra.mxu0 %v1292
        %1505 = vmatmul.bf16.gmra.mxu0 %v738
        %v1506 = vpop.f32.mrf.mxu0
        %v1507 = vadd.f32 %v1494, %v1506
        %v1508 = vpop.f32.mrf.mxu0
        %1509 = vdwg.mxu0
        %v1510 = vsel %vm292, %v1507, -inf
        %1511 = vmax.xlane.f32.xlu0 %v1510
        %v1512 = vpop.xlane.xlu0 %1511
        %v1513 = vsub.f32 %v1507, %v1512
        %v1514 = vmul.f32 %v1513, 1.442695
        %v1515 = vpow.pop %v1514
        %v1516 = vsel %vm292, %v1515, 0.0
        %1517 = vadd.xlane.f32.xlu0 %v1516
        %v1518 = vpop.xlane.xlu0 %1517
        %v1519 = vrcp.pop %v1518
        %v1520 = vmul.f32 %v1518, %v1519
        %v1521 = vsub.f32 1.0, %v1520
        %v1522 = vmul.f32 %v1519, %v1521
        %v1523 = vadd.f32 %v1519, %v1522
        %vm1524 = vweird.f32 %v1518
        %vm1525 = vweird.f32 %v1519
        %vm1526 = vmor %vm1524, %vm1525
        %v1527 = vsel %vm1526, %v1519, %v1523
        %v1528 = vand.u32 2147483647, %v1518
        %vm1529 = vcmp.eq.f32.partialorder %v1528, 8.507059e+37
        %v1530 = vand.u32 %v1518, 2147483648
        %v1531 = vor.u32 1.1754944e-38, %v1530
        %v1532 = vsel %vm1529, %v1531, %v1527
        %v1533 = vmul.f32 %v1515, %v1532
        %1534 = vst [vmem:[%s241] sm:$0x1] %v1533
        %s1535 = sand.u32 %s159, 1
        %s1536 = scalar_lea.sflag [#allocation3], %s1535
        %s1537 = sand.u32 %s159, 1
        %s1538 = scalar_lea.vmem [#allocation2], %s1537
        // Predicated region
        $region45: #{rexnet_forward.1} parent=43 // pred_check
          %p1539 = pneg %p169
        $region46: #{rexnet_forward.1} parent=43 // pred_check_branch
          %1541 = sbr.rel (%p1539) target = $region48
        $region47: #{rexnet_forward.1} parent=43 // pred_region
          %1543 = vsyncadd %s1536, 0
          %s1544 = scalar_lea.hbm %s6, %s20
          %s1546 = sshll.u32 %s1538, 4
          %s1547 = int_to_ptr.vmem [resolvable:$true] %s1546
          %s1548 = sshll.u32 %s1544, 4
          %s1549 = int_to_ptr.hbm [resolvable:$true] %s1548
          %1551 = dma.vmem_to_hbm [thread:$0]  %s1547, 16, %s1549, %s1536
        $region48: #{rexnet_forward.1} parent=43 // pred_fallthru
          _
      $region44: #{rexnet_forward.1} parent=5 // pred_fallthru
        _
      %p1552 = scmp.le.s32.totalorder 2, %s15
      // Predicated region
      $region49: #{rexnet_forward.1} parent=5 // pred_check
        %p1553 = pneg %p1552
      $region50: #{rexnet_forward.1} parent=5 // pred_check_branch
        %1555 = sbr.rel (%p1553) target = $region52
      $region51: #{rexnet_forward.1} parent=5 // pred_region
        %s1556 = ssub.s32 %s15, 2
        // Predicated region
        $region53: #{rexnet_forward.1} parent=51 // pred_check
          %p1557 = pneg %p175
        $region54: #{rexnet_forward.1} parent=51 // pred_check_branch
          %1559 = sbr.rel (%p1557) target = $region56
        $region55: #{rexnet_forward.1} parent=51 // pred_region
          %s1560 = sand.u32 %s160, 1
          %s1561 = scalar_lea.sflag [#allocation3], %s1560
          %s1562 = sand.u32 %s160, 1
          %s1563 = scalar_lea.vmem [#allocation2], %s1562
          %1565 = dma.done %s1561, 16
        $region56: #{rexnet_forward.1} parent=51 // pred_fallthru
          _
      $region52: #{rexnet_forward.1} parent=5 // pred_fallthru
        _
    $region6: #{rexnet_forward.1} parent=1 // loop_footer
      %s19 = sadd.s32 1, %s15
    $region7: #{rexnet_forward.1} parent=1 // loop_footer_branch
      %14 = sbr.rel target = $region3
    $region8: #{rexnet_forward.1} parent=1 // loop_exit
      _
    %1566 = vsyncpa [#allocation3], 1
    %s1567 = scalar_lea.sflag [#allocation3], 1
    %1568 = vsyncpa %s1567, 1

</llo_original>
